<compile_context>
chip_gen: v7x
topology: tpu7x:2x2x1
jax: 0.10.0
libtpu: 0.0.40
codegen_flags: <defaults>
</compile_context>

<pallas_src>
import functools

import jax
import jax.numpy as jnp
from jax.experimental import pallas as pl
from jax.experimental.pallas import tpu as pltpu


def _round_up(a, b):
    return (a + b - 1) // b * b


# ----------------------------- fused FFN kernel ------------------------------
def _ffn_kernel(x_ref, w1_ref, b1_ref, w2_ref, b2_ref, g_ref, beta_ref,
                o_ref, acc_ref, *, eps, compute_dtype):
    k = pl.program_id(1)

    @pl.when(k == 0)
    def _():
        acc_ref[...] = jnp.zeros_like(acc_ref)

    x = x_ref[...]                                                 # (bm, d_in)
    xc = x.astype(compute_dtype)

    # first linear (MXU, f32 accumulate) + bias + ReLU for this hidden-dim tile
    h = jnp.dot(xc, w1_ref[...], preferred_element_type=jnp.float32) + b1_ref[...]
    h = jnp.maximum(h, 0.0)                                        # (bm, bk)

    # second linear: this hidden-dim tile's contribution to the output
    acc_ref[...] += jnp.dot(h.astype(compute_dtype), w2_ref[...],
                            preferred_element_type=jnp.float32)    # (bm, d_in)

    @pl.when(k == pl.num_programs(1) - 1)
    def _():
        # bias + residual + LayerNorm epilogue (all f32, per-row)
        y = acc_ref[...] + b2_ref[...] + x.astype(jnp.float32)
        mu = jnp.mean(y, axis=-1, keepdims=True)
        ms = jnp.mean(y * y, axis=-1, keepdims=True)
        var = jnp.maximum(ms - mu * mu, 0.0)       # biased variance, like torch LN
        out = (y - mu) * jax.lax.rsqrt(var + eps)
        o_ref[...] = (out * g_ref[...] + beta_ref[...]).astype(o_ref.dtype)


# --------------------------------- wrapper ------------------------------------
def position_wise_feed_forward(x, params, *, eps=1e-6, block_rows=256,
                               matmul_dtype=None):
    """x: (batch, seq, d_in) -> (batch, seq, d_in)."""
    b, s, d_in = x.shape
    d_hid = params["w1"].shape[1]
    n = b * s
    x2 = x.reshape(n, d_in)

    # ------- dtypes -------
    x_itemsize = jnp.dtype(x.dtype).itemsize
    w_dtype = jnp.dtype(matmul_dtype) if matmul_dtype is not None else jnp.dtype(x.dtype)
    w_itemsize = w_dtype.itemsize

    w1 = params["w1"].astype(w_dtype)
    w2 = params["w2"].astype(w_dtype)
    b1 = params["b1"].astype(jnp.float32).reshape(1, d_hid)
    b2 = params["b2"].astype(jnp.float32).reshape(1, d_in)
    g = params["ln_gamma"].astype(jnp.float32).reshape(1, d_in)
    beta = params["ln_beta"].astype(jnp.float32).reshape(1, d_in)

    # ------- row tile (sublane aligned; >=2 grid steps when n allows, for v7x) -------
    align = {4: 8, 2: 16, 1: 32}.get(x_itemsize, 8)
    block_rows = _round_up(max(block_rows, align), align)
    bm = max(align, min(block_rows, _round_up(pl.cdiv(n, 2), align)))

    # ------- per-chip VMEM budget -------
    try:
        vmem_cap = int(pltpu.get_tpu_info().vmem_capacity_bytes)
    except Exception:
        vmem_cap = 64 << 20                      # conservative (v7x) fallback
    budget = vmem_cap - (8 << 20)                # headroom for compiler scratch

    def est(bm_, bk_, nk_):
        wbuf = 1 if nk_ == 1 else 2              # Buffered(1) when resident
        by = 0
        by += 2 * bm_ * d_in * x_itemsize        # x tile (double-buffered)
        by += 2 * bm_ * d_in * x_itemsize        # out tile (double-buffered)
        by += bm_ * d_in * 4                     # f32 accumulator scratch
        by += bm_ * bk_ * 4                      # f32 hidden intermediate
        by += wbuf * (2 * d_in * bk_ * w_itemsize + bk_ * 4)   # W1/W2/b1 tiles
        by += 3 * d_in * 4                       # b2, gamma, beta (single-buffered)
        return by

    # ------- hidden-dim (K) tiling: resident when it fits, streamed otherwise -------
    bk, nk = d_hid, 1
    while est(bm, bk, nk) > budget and bk % 256 == 0:
        bk //= 2                                 # stays a multiple of 128, divides d_hid
        nk = d_hid // bk
    while est(bm, bk, nk) > budget and bm > align:
        bm = max(align, _round_up(bm // 2, align))
    # TODO(synk): for d_hid not a multiple of 256 that still overflows VMEM, add a
    #             masked ragged-K path instead of falling back to resident weights.

    grid = (pl.cdiv(n, bm), nk)
    wbufs = 1 if nk == 1 else 2

    def build(use_pipeline_mode):
        def cspec(shape, index_map, bufs):
            if use_pipeline_mode:
                return pl.BlockSpec(shape, index_map, pipeline_mode=pl.Buffered(bufs))
            return pl.BlockSpec(shape, index_map)

        in_specs = [
            pl.BlockSpec((bm, d_in), lambda i, k: (i, 0)),          # x row tile
            cspec((d_in, bk), lambda i, k: (0, k), wbufs),          # W1 tile
            cspec((1, bk), lambda i, k: (0, k), wbufs),             # b1 tile
            cspec((bk, d_in), lambda i, k: (k, 0), wbufs),          # W2 tile
            cspec((1, d_in), lambda i, k: (0, 0), 1),               # b2
            cspec((1, d_in), lambda i, k: (0, 0), 1),               # LN gamma
            cspec((1, d_in), lambda i, k: (0, 0), 1),               # LN beta
        ]
        return pl.pallas_call(
            functools.partial(_ffn_kernel, eps=eps, compute_dtype=w_dtype),
            out_shape=jax.ShapeDtypeStruct((n, d_in), x.dtype),
            grid=grid,
            in_specs=in_specs,
            out_specs=pl.BlockSpec((bm, d_in), lambda i, k: (i, 0)),
            scratch_shapes=[pltpu.VMEM((bm, d_in), jnp.float32)],
            compiler_params=pltpu.CompilerParams(
                dimension_semantics=("parallel", "arbitrary"),
                vmem_limit_bytes=int(budget),
            ),
        )

    args = (x2, w1, b1, w2, b2, g, beta)
    try:
        out = build(True)(*args)
    except Exception:
        # Fallback for JAX versions without BlockSpec(pipeline_mode=...):
        # identical semantics, default double-buffered constants.
        out = build(False)(*args)

    return out.reshape(b, s, d_in)


# ------------------------------ pure-JAX reference ----------------------------
def _reference(x, params, eps=1e-6):
    h = jnp.maximum(jnp.einsum("bsd,dh->bsh", x, params["w1"]) + params["b1"], 0.0)
    y = jnp.einsum("bsh,hd->bsd", h, params["w2"]) + params["b2"] + x
    mu = jnp.mean(y, axis=-1, keepdims=True)
    var = jnp.mean((y - mu) ** 2, axis=-1, keepdims=True)
    return (y - mu) / jnp.sqrt(var + eps) * params["ln_gamma"] + params["ln_beta"]


# ----------------------------------- main --------------------------------------
if __name__ == "__main__":
    batch, seq, d_in, d_hid = 2, 8, 32, 64

    key = jax.random.PRNGKey(0)
    ks = jax.random.split(key, 5)

    params = {
        "w1": 0.1 * jax.random.normal(ks[0], (d_in, d_hid), jnp.float32),
        "b1": 0.01 * jax.random.normal(ks[1], (d_hid,), jnp.float32),
        "w2": 0.1 * jax.random.normal(ks[2], (d_hid, d_in), jnp.float32),
        "b2": 0.01 * jax.random.normal(ks[3], (d_in,), jnp.float32),
        "ln_gamma": jnp.ones((d_in,), jnp.float32),   # torch LayerNorm default init
        "ln_beta": jnp.zeros((d_in,), jnp.float32),
    }

    x = jax.random.normal(ks[4], (batch, seq, d_in), jnp.float32)
    y_ref = _reference(x, params, eps=1e-6)

    # exact-dtype path (f32 matmuls)
    y = position_wise_feed_forward(x, params, eps=1e-6)
    jax.block_until_ready(y)
    assert y.shape == (batch, seq, d_in)
    assert jnp.allclose(y, y_ref, atol=1e-3, rtol=1e-3), (
        float(jnp.max(jnp.abs(y - y_ref)))
    )

    # bf16 MXU fast path (f32 accumulation + f32 LayerNorm epilogue)
    y_bf = position_wise_feed_forward(x, params, eps=1e-6,
                                      matmul_dtype=jnp.bfloat16)
    jax.block_until_ready(y_bf)
    assert jnp.allclose(y_bf, y_ref, atol=2e-2, rtol=2e-2), (
        float(jnp.max(jnp.abs(y_bf - y_ref)))
    )

    print("KERNEL_OK")
</pallas_src>

<mosaic_0001>
module attributes {stable_mosaic.version = 11 : i64} {
  func.func @_ffn_kernel(%arg0: i32, %arg1: i32, %arg2: memref<8x32xf32, #tpu.memory_space<vmem>>, %arg3: memref<32x64xf32, #tpu.memory_space<vmem>>, %arg4: memref<1x64xf32, #tpu.memory_space<vmem>>, %arg5: memref<64x32xf32, #tpu.memory_space<vmem>>, %arg6: memref<1x32xf32, #tpu.memory_space<vmem>>, %arg7: memref<1x32xf32, #tpu.memory_space<vmem>>, %arg8: memref<1x32xf32, #tpu.memory_space<vmem>>, %arg9: memref<8x32xf32, #tpu.memory_space<vmem>>, %arg10: memref<8x32xf32, #tpu.memory_space<vmem>>) attributes {dimension_semantics = [#tpu.dimension_semantics<parallel>, #tpu.dimension_semantics<arbitrary>], iteration_bounds = array<i64: 2, 1>, scalar_prefetch = 0 : i64, scratch_operands = 1 : i64, tpu.core_type = #tpu.core_type<tc>, window_params = [{transform_indices = @transform_0, window_bounds = array<i64: 8, 32>}, {pipeline_mode = #tpu.pipeline_mode<synchronous>, transform_indices = @transform_1, window_bounds = array<i64: 32, 64>}, {pipeline_mode = #tpu.pipeline_mode<synchronous>, transform_indices = @transform_2, window_bounds = array<i64: 1, 64>}, {pipeline_mode = #tpu.pipeline_mode<synchronous>, transform_indices = @transform_3, window_bounds = array<i64: 64, 32>}, {pipeline_mode = #tpu.pipeline_mode<synchronous>, transform_indices = @transform_4, window_bounds = array<i64: 1, 32>}, {pipeline_mode = #tpu.pipeline_mode<synchronous>, transform_indices = @transform_5, window_bounds = array<i64: 1, 32>}, {pipeline_mode = #tpu.pipeline_mode<synchronous>, transform_indices = @transform_6, window_bounds = array<i64: 1, 32>}, {transform_indices = @transform_7, window_bounds = array<i64: 8, 32>}]} {
    %c0_i32 = arith.constant 0 : i32
    %0 = arith.cmpi eq, %arg1, %c0_i32 : i32
    %1 = arith.extui %0 : i1 to i32
    %c0_i32_0 = arith.constant 0 : i32
    %2 = arith.cmpi ne, %1, %c0_i32_0 : i32
    scf.if %2 {
      %cst_16 = arith.constant 0.000000e+00 : f32
      %19 = vector.broadcast %cst_16 : f32 to vector<8x32xf32>
      %c0_17 = arith.constant 0 : index
      %c0_18 = arith.constant 0 : index
      %20 = vector.load %arg10[%c0_17, %c0_18] : memref<8x32xf32, #tpu.memory_space<vmem>>, vector<8x32xf32>
      tpu.vector_store %arg10[%c0_17, %c0_18], %19 {strides = array<i32>} : memref<8x32xf32, #tpu.memory_space<vmem>>, vector<8x32xf32>,
    } else {
    }
    %c0 = arith.constant 0 : index
    %c0_1 = arith.constant 0 : index
    %3 = vector.load %arg2[%c0, %c0_1] : memref<8x32xf32, #tpu.memory_space<vmem>>, vector<8x32xf32>
    %c0_2 = arith.constant 0 : index
    %c0_3 = arith.constant 0 : index
    %4 = vector.load %arg3[%c0_2, %c0_3] : memref<32x64xf32, #tpu.memory_space<vmem>>, vector<32x64xf32>
    %cst = arith.constant dense<0.000000e+00> : vector<8x64xf32>
    %5 = tpu.matmul %3, %4, %cst {dimension_numbers = #tpu.dot_dimension_numbers<[1], [0], [0], [1], [0, 0, 1, 1], [], []>} : vector<8x32xf32>, vector<32x64xf32>, vector<8x64xf32> -> vector<8x64xf32>
    %c0_4 = arith.constant 0 : index
    %c0_5 = arith.constant 0 : index
    %6 = vector.load %arg4[%c0_4, %c0_5] : memref<1x64xf32, #tpu.memory_space<vmem>>, vector<1x64xf32>
    %7 = vector.broadcast %6 : vector<1x64xf32> to vector<8x64xf32>
    %8 = arith.addf %5, %7 : vector<8x64xf32>
    %cst_6 = arith.constant 0.000000e+00 : f32
    %9 = vector.broadcast %cst_6 : f32 to vector<8x64xf32>
    %10 = arith.maximumf %8, %9 : vector<8x64xf32>
    %c0_7 = arith.constant 0 : index
    %c0_8 = arith.constant 0 : index
    %11 = vector.load %arg10[%c0_7, %c0_8] : memref<8x32xf32, #tpu.memory_space<vmem>>, vector<8x32xf32>
    %c0_9 = arith.constant 0 : index
    %c0_10 = arith.constant 0 : index
    %12 = vector.load %arg5[%c0_9, %c0_10] : memref<64x32xf32, #tpu.memory_space<vmem>>, vector<64x32xf32>
    %cst_11 = arith.constant dense<0.000000e+00> : vector<8x32xf32>
    %13 = tpu.matmul %10, %12, %cst_11 {dimension_numbers = #tpu.dot_dimension_numbers<[1], [0], [0], [1], [0, 0, 1, 1], [], []>} : vector<8x64xf32>, vector<64x32xf32>, vector<8x32xf32> -> vector<8x32xf32>
    %14 = arith.addf %11, %13 : vector<8x32xf32>
    %c0_12 = arith.constant 0 : index
    %c0_13 = arith.constant 0 : index
    %15 = vector.load %arg10[%c0_12, %c0_13] : memref<8x32xf32, #tpu.memory_space<vmem>>, vector<8x32xf32>
    tpu.vector_store %arg10[%c0_12, %c0_13], %14 {strides = array<i32>} : memref<8x32xf32, #tpu.memory_space<vmem>>, vector<8x32xf32>,
    %c0_i32_14 = arith.constant 0 : i32
    %16 = arith.cmpi eq, %arg1, %c0_i32_14 : i32
    %17 = arith.extui %16 : i1 to i32
    %c0_i32_15 = arith.constant 0 : i32
    %18 = arith.cmpi ne, %17, %c0_i32_15 : i32
    scf.if %18 {
      %c0_16 = arith.constant 0 : index
      %c0_17 = arith.constant 0 : index
      %19 = vector.load %arg10[%c0_16, %c0_17] : memref<8x32xf32, #tpu.memory_space<vmem>>, vector<8x32xf32>
      %c0_18 = arith.constant 0 : index
      %c0_19 = arith.constant 0 : index
      %20 = vector.load %arg6[%c0_18, %c0_19] : memref<1x32xf32, #tpu.memory_space<vmem>>, vector<1x32xf32>
      %21 = vector.broadcast %20 : vector<1x32xf32> to vector<8x32xf32>
      %22 = arith.addf %19, %21 : vector<8x32xf32>
      %23 = arith.addf %22, %3 : vector<8x32xf32>
      %cst_20 = arith.constant dense<0.000000e+00> : vector<8xf32>
      %24 = vector.multi_reduction <add>, %23, %cst_20 [1] : vector<8x32xf32> to vector<8xf32>
      %25 = vector.shape_cast %24 : vector<8xf32> to vector<8x1xf32>
      %cst_21 = arith.constant 3.200000e+01 : f32
      %26 = vector.broadcast %cst_21 : f32 to vector<8x1xf32>
      %27 = arith.divf %25, %26 : vector<8x1xf32>
      %28 = arith.mulf %23, %23 : vector<8x32xf32>
      %cst_22 = arith.constant dense<0.000000e+00> : vector<8xf32>
      %29 = vector.multi_reduction <add>, %28, %cst_22 [1] : vector<8x32xf32> to vector<8xf32>
      %30 = vector.shape_cast %29 : vector<8xf32> to vector<8x1xf32>
      %cst_23 = arith.constant 3.200000e+01 : f32
      %31 = vector.broadcast %cst_23 : f32 to vector<8x1xf32>
      %32 = arith.divf %30, %31 : vector<8x1xf32>
      %33 = arith.mulf %27, %27 : vector<8x1xf32>
      %34 = arith.subf %32, %33 : vector<8x1xf32>
      %cst_24 = arith.constant 0.000000e+00 : f32
      %35 = vector.broadcast %cst_24 : f32 to vector<8x1xf32>
      %36 = arith.maximumf %34, %35 : vector<8x1xf32>
      %37 = vector.broadcast %27 : vector<8x1xf32> to vector<8x32xf32>
      %38 = arith.subf %23, %37 : vector<8x32xf32>
      %cst_25 = arith.constant 9.99999997E-7 : f32
      %39 = vector.broadcast %cst_25 : f32 to vector<8x1xf32>
      %40 = arith.addf %36, %39 : vector<8x1xf32>
      %41 = math.rsqrt %40 : vector<8x1xf32>
      %42 = vector.broadcast %41 : vector<8x1xf32> to vector<8x32xf32>
      %43 = arith.mulf %38, %42 : vector<8x32xf32>
      %c0_26 = arith.constant 0 : index
      %c0_27 = arith.constant 0 : index
      %44 = vector.load %arg7[%c0_26, %c0_27] : memref<1x32xf32, #tpu.memory_space<vmem>>, vector<1x32xf32>
      %45 = vector.broadcast %44 : vector<1x32xf32> to vector<8x32xf32>
      %46 = arith.mulf %43, %45 : vector<8x32xf32>
      %c0_28 = arith.constant 0 : index
      %c0_29 = arith.constant 0 : index
      %47 = vector.load %arg8[%c0_28, %c0_29] : memref<1x32xf32, #tpu.memory_space<vmem>>, vector<1x32xf32>
      %48 = vector.broadcast %47 : vector<1x32xf32> to vector<8x32xf32>
      %49 = arith.addf %46, %48 : vector<8x32xf32>
      %c0_30 = arith.constant 0 : index
      %c0_31 = arith.constant 0 : index
      %50 = vector.load %arg9[%c0_30, %c0_31] : memref<8x32xf32, #tpu.memory_space<vmem>>, vector<8x32xf32>
      tpu.vector_store %arg9[%c0_30, %c0_31], %49 {strides = array<i32>} : memref<8x32xf32, #tpu.memory_space<vmem>>, vector<8x32xf32>,
    } else {
    }
    return
  }
  func.func @transform_0(%arg0: i32, %arg1: i32) -> (i32, i32) {
    %c0_i32 = arith.constant 0 : i32
    %c0_i32_0 = arith.constant 0 : i32
    return %arg0, %c0_i32 : i32, i32
  }
  func.func @transform_1(%arg0: i32, %arg1: i32) -> (i32, i32) {
    %c0_i32 = arith.constant 0 : i32
    %c0_i32_0 = arith.constant 0 : i32
    return %c0_i32, %arg1 : i32, i32
  }
  func.func @transform_2(%arg0: i32, %arg1: i32) -> (i32, i32) {
    %c0_i32 = arith.constant 0 : i32
    %c0_i32_0 = arith.constant 0 : i32
    return %c0_i32, %arg1 : i32, i32
  }
  func.func @transform_3(%arg0: i32, %arg1: i32) -> (i32, i32) {
    %c0_i32 = arith.constant 0 : i32
    %c0_i32_0 = arith.constant 0 : i32
    return %arg1, %c0_i32 : i32, i32
  }
  func.func @transform_4(%arg0: i32, %arg1: i32) -> (i32, i32) {
    %c0_i32 = arith.constant 0 : i32
    %c0_i32_0 = arith.constant 0 : i32
    %c0_i32_1 = arith.constant 0 : i32
    return %c0_i32, %c0_i32_0 : i32, i32
  }
  func.func @transform_5(%arg0: i32, %arg1: i32) -> (i32, i32) {
    %c0_i32 = arith.constant 0 : i32
    %c0_i32_0 = arith.constant 0 : i32
    %c0_i32_1 = arith.constant 0 : i32
    return %c0_i32, %c0_i32_0 : i32, i32
  }
  func.func @transform_6(%arg0: i32, %arg1: i32) -> (i32, i32) {
    %c0_i32 = arith.constant 0 : i32
    %c0_i32_0 = arith.constant 0 : i32
    %c0_i32_1 = arith.constant 0 : i32
    return %c0_i32, %c0_i32_0 : i32, i32
  }
  func.func @transform_7(%arg0: i32, %arg1: i32) -> (i32, i32) {
    %c0_i32 = arith.constant 0 : i32
    %c0_i32_0 = arith.constant 0 : i32
    return %arg0, %c0_i32 : i32, i32
  }
}

module attributes {stable_mosaic.version = 11 : i64} {
  func.func @_ffn_kernel(%arg0: i32, %arg1: i32, %arg2: memref<8x32xf32, #tpu.memory_space<vmem>>, %arg3: memref<32x64xf32, #tpu.memory_space<vmem>>, %arg4: memref<1x64xf32, #tpu.memory_space<vmem>>, %arg5: memref<64x32xf32, #tpu.memory_space<vmem>>, %arg6: memref<1x32xf32, #tpu.memory_space<vmem>>, %arg7: memref<1x32xf32, #tpu.memory_space<vmem>>, %arg8: memref<1x32xf32, #tpu.memory_space<vmem>>, %arg9: memref<8x32xf32, #tpu.memory_space<vmem>>, %arg10: memref<8x32xf32, #tpu.memory_space<vmem>>) attributes {dimension_semantics = [#tpu.dimension_semantics<parallel>, #tpu.dimension_semantics<arbitrary>], iteration_bounds = array<i64: 2, 1>, scalar_prefetch = 0 : i64, scratch_operands = 1 : i64, tpu.core_type = #tpu.core_type<tc>, window_params = [{transform_indices = @transform_0, window_bounds = array<i64: 8, 32>}, {transform_indices = @transform_1, window_bounds = array<i64: 32, 64>}, {transform_indices = @transform_2, window_bounds = array<i64: 1, 64>}, {transform_indices = @transform_3, window_bounds = array<i64: 64, 32>}, {pipeline_mode = #tpu.pipeline_mode<synchronous>, transform_indices = @transform_4, window_bounds = array<i64: 1, 32>}, {pipeline_mode = #tpu.pipeline_mode<synchronous>, transform_indices = @transform_5, window_bounds = array<i64: 1, 32>}, {pipeline_mode = #tpu.pipeline_mode<synchronous>, transform_indices = @transform_6, window_bounds = array<i64: 1, 32>}, {transform_indices = @transform_7, window_bounds = array<i64: 8, 32>}]} {
    %c0_i32 = arith.constant 0 : i32
    %0 = arith.cmpi eq, %arg1, %c0_i32 : i32
    %1 = arith.extui %0 : i1 to i32
    %c0_i32_0 = arith.constant 0 : i32
    %2 = arith.cmpi ne, %1, %c0_i32_0 : i32
    scf.if %2 {
      %cst_16 = arith.constant 0.000000e+00 : f32
      %19 = vector.broadcast %cst_16 : f32 to vector<8x32xf32>
      %c0_17 = arith.constant 0 : index
      %c0_18 = arith.constant 0 : index
      %20 = vector.load %arg10[%c0_17, %c0_18] : memref<8x32xf32, #tpu.memory_space<vmem>>, vector<8x32xf32>
      tpu.vector_store %arg10[%c0_17, %c0_18], %19 {strides = array<i32>} : memref<8x32xf32, #tpu.memory_space<vmem>>, vector<8x32xf32>,
    } else {
    }
    %c0 = arith.constant 0 : index
    %c0_1 = arith.constant 0 : index
    %3 = vector.load %arg2[%c0, %c0_1] : memref<8x32xf32, #tpu.memory_space<vmem>>, vector<8x32xf32>
    %c0_2 = arith.constant 0 : index
    %c0_3 = arith.constant 0 : index
    %4 = vector.load %arg3[%c0_2, %c0_3] : memref<32x64xf32, #tpu.memory_space<vmem>>, vector<32x64xf32>
    %cst = arith.constant dense<0.000000e+00> : vector<8x64xf32>
    %5 = tpu.matmul %3, %4, %cst {dimension_numbers = #tpu.dot_dimension_numbers<[1], [0], [0], [1], [0, 0, 1, 1], [], []>} : vector<8x32xf32>, vector<32x64xf32>, vector<8x64xf32> -> vector<8x64xf32>
    %c0_4 = arith.constant 0 : index
    %c0_5 = arith.constant 0 : index
    %6 = vector.load %arg4[%c0_4, %c0_5] : memref<1x64xf32, #tpu.memory_space<vmem>>, vector<1x64xf32>
    %7 = vector.broadcast %6 : vector<1x64xf32> to vector<8x64xf32>
    %8 = arith.addf %5, %7 : vector<8x64xf32>
    %cst_6 = arith.constant 0.000000e+00 : f32
    %9 = vector.broadcast %cst_6 : f32 to vector<8x64xf32>
    %10 = arith.maximumf %8, %9 : vector<8x64xf32>
    %c0_7 = arith.constant 0 : index
    %c0_8 = arith.constant 0 : index
    %11 = vector.load %arg10[%c0_7, %c0_8] : memref<8x32xf32, #tpu.memory_space<vmem>>, vector<8x32xf32>
    %c0_9 = arith.constant 0 : index
    %c0_10 = arith.constant 0 : index
    %12 = vector.load %arg5[%c0_9, %c0_10] : memref<64x32xf32, #tpu.memory_space<vmem>>, vector<64x32xf32>
    %cst_11 = arith.constant dense<0.000000e+00> : vector<8x32xf32>
    %13 = tpu.matmul %10, %12, %cst_11 {dimension_numbers = #tpu.dot_dimension_numbers<[1], [0], [0], [1], [0, 0, 1, 1], [], []>} : vector<8x64xf32>, vector<64x32xf32>, vector<8x32xf32> -> vector<8x32xf32>
    %14 = arith.addf %11, %13 : vector<8x32xf32>
    %c0_12 = arith.constant 0 : index
    %c0_13 = arith.constant 0 : index
    %15 = vector.load %arg10[%c0_12, %c0_13] : memref<8x32xf32, #tpu.memory_space<vmem>>, vector<8x32xf32>
    tpu.vector_store %arg10[%c0_12, %c0_13], %14 {strides = array<i32>} : memref<8x32xf32, #tpu.memory_space<vmem>>, vector<8x32xf32>,
    %c0_i32_14 = arith.constant 0 : i32
    %16 = arith.cmpi eq, %arg1, %c0_i32_14 : i32
    %17 = arith.extui %16 : i1 to i32
    %c0_i32_15 = arith.constant 0 : i32
    %18 = arith.cmpi ne, %17, %c0_i32_15 : i32
    scf.if %18 {
      %c0_16 = arith.constant 0 : index
      %c0_17 = arith.constant 0 : index
      %19 = vector.load %arg10[%c0_16, %c0_17] : memref<8x32xf32, #tpu.memory_space<vmem>>, vector<8x32xf32>
      %c0_18 = arith.constant 0 : index
      %c0_19 = arith.constant 0 : index
      %20 = vector.load %arg6[%c0_18, %c0_19] : memref<1x32xf32, #tpu.memory_space<vmem>>, vector<1x32xf32>
      %21 = vector.broadcast %20 : vector<1x32xf32> to vector<8x32xf32>
      %22 = arith.addf %19, %21 : vector<8x32xf32>
      %23 = arith.addf %22, %3 : vector<8x32xf32>
      %cst_20 = arith.constant dense<0.000000e+00> : vector<8xf32>
      %24 = vector.multi_reduction <add>, %23, %cst_20 [1] : vector<8x32xf32> to vector<8xf32>
      %25 = vector.shape_cast %24 : vector<8xf32> to vector<8x1xf32>
      %cst_21 = arith.constant 3.200000e+01 : f32
      %26 = vector.broadcast %cst_21 : f32 to vector<8x1xf32>
      %27 = arith.divf %25, %26 : vector<8x1xf32>
      %28 = arith.mulf %23, %23 : vector<8x32xf32>
      %cst_22 = arith.constant dense<0.000000e+00> : vector<8xf32>
      %29 = vector.multi_reduction <add>, %28, %cst_22 [1] : vector<8x32xf32> to vector<8xf32>
      %30 = vector.shape_cast %29 : vector<8xf32> to vector<8x1xf32>
      %cst_23 = arith.constant 3.200000e+01 : f32
      %31 = vector.broadcast %cst_23 : f32 to vector<8x1xf32>
      %32 = arith.divf %30, %31 : vector<8x1xf32>
      %33 = arith.mulf %27, %27 : vector<8x1xf32>
      %34 = arith.subf %32, %33 : vector<8x1xf32>
      %cst_24 = arith.constant 0.000000e+00 : f32
      %35 = vector.broadcast %cst_24 : f32 to vector<8x1xf32>
      %36 = arith.maximumf %34, %35 : vector<8x1xf32>
      %37 = vector.broadcast %27 : vector<8x1xf32> to vector<8x32xf32>
      %38 = arith.subf %23, %37 : vector<8x32xf32>
      %cst_25 = arith.constant 9.99999997E-7 : f32
      %39 = vector.broadcast %cst_25 : f32 to vector<8x1xf32>
      %40 = arith.addf %36, %39 : vector<8x1xf32>
      %41 = math.rsqrt %40 : vector<8x1xf32>
      %42 = vector.broadcast %41 : vector<8x1xf32> to vector<8x32xf32>
      %43 = arith.mulf %38, %42 : vector<8x32xf32>
      %c0_26 = arith.constant 0 : index
      %c0_27 = arith.constant 0 : index
      %44 = vector.load %arg7[%c0_26, %c0_27] : memref<1x32xf32, #tpu.memory_space<vmem>>, vector<1x32xf32>
      %45 = vector.broadcast %44 : vector<1x32xf32> to vector<8x32xf32>
      %46 = arith.mulf %43, %45 : vector<8x32xf32>
      %c0_28 = arith.constant 0 : index
      %c0_29 = arith.constant 0 : index
      %47 = vector.load %arg8[%c0_28, %c0_29] : memref<1x32xf32, #tpu.memory_space<vmem>>, vector<1x32xf32>
      %48 = vector.broadcast %47 : vector<1x32xf32> to vector<8x32xf32>
      %49 = arith.addf %46, %48 : vector<8x32xf32>
      %c0_30 = arith.constant 0 : index
      %c0_31 = arith.constant 0 : index
      %50 = vector.load %arg9[%c0_30, %c0_31] : memref<8x32xf32, #tpu.memory_space<vmem>>, vector<8x32xf32>
      tpu.vector_store %arg9[%c0_30, %c0_31], %49 {strides = array<i32>} : memref<8x32xf32, #tpu.memory_space<vmem>>, vector<8x32xf32>,
    } else {
    }
    return
  }
  func.func @transform_0(%arg0: i32, %arg1: i32) -> (i32, i32) {
    %c0_i32 = arith.constant 0 : i32
    %c0_i32_0 = arith.constant 0 : i32
    return %arg0, %c0_i32 : i32, i32
  }
  func.func @transform_1(%arg0: i32, %arg1: i32) -> (i32, i32) {
    %c0_i32 = arith.constant 0 : i32
    %c0_i32_0 = arith.constant 0 : i32
    return %c0_i32, %arg1 : i32, i32
  }
  func.func @transform_2(%arg0: i32, %arg1: i32) -> (i32, i32) {
    %c0_i32 = arith.constant 0 : i32
    %c0_i32_0 = arith.constant 0 : i32
    return %c0_i32, %arg1 : i32, i32
  }
  func.func @transform_3(%arg0: i32, %arg1: i32) -> (i32, i32) {
    %c0_i32 = arith.constant 0 : i32
    %c0_i32_0 = arith.constant 0 : i32
    return %arg1, %c0_i32 : i32, i32
  }
  func.func @transform_4(%arg0: i32, %arg1: i32) -> (i32, i32) {
    %c0_i32 = arith.constant 0 : i32
    %c0_i32_0 = arith.constant 0 : i32
    %c0_i32_1 = arith.constant 0 : i32
    return %c0_i32, %c0_i32_0 : i32, i32
  }
  func.func @transform_5(%arg0: i32, %arg1: i32) -> (i32, i32) {
    %c0_i32 = arith.constant 0 : i32
    %c0_i32_0 = arith.constant 0 : i32
    %c0_i32_1 = arith.constant 0 : i32
    return %c0_i32, %c0_i32_0 : i32, i32
  }
  func.func @transform_6(%arg0: i32, %arg1: i32) -> (i32, i32) {
    %c0_i32 = arith.constant 0 : i32
    %c0_i32_0 = arith.constant 0 : i32
    %c0_i32_1 = arith.constant 0 : i32
    return %c0_i32, %c0_i32_0 : i32, i32
  }
  func.func @transform_7(%arg0: i32, %arg1: i32) -> (i32, i32) {
    %c0_i32 = arith.constant 0 : i32
    %c0_i32_0 = arith.constant 0 : i32
    return %arg0, %c0_i32 : i32, i32
  }
}

</mosaic_0001>

<llo_original>
// kernel: tpu_custom_call.1
$region0: #{tpu_custom_call.1}
  #allocation0 [shape = 'u32[]', space=smem, size = 0x4, offset = 0x4, fixed_abs, tag = 'smem constant byte address 0x4 - core index']
  #allocation1 [shape = 'u32[144,128]{1,0:T(1,128)}', space=vmem, size = 0x12000, scoped, tag = 'internal scratch']
  #allocation2 [shape = 'f32[8,32]{1,0:T(8,128)}', space=vmem, size = 0x1000, scoped, tag = 'scratch operand']
  %s0 = inlined_call_operand.vmem [shape: f32[16,32], index: 0, kind: input, shape index: {}]
  %s1 = inlined_call_operand.vmem [shape: f32[32,64], index: 1, kind: input, shape index: {}]
  %s2 = inlined_call_operand.vmem [shape: f32[1,64], index: 2, kind: input, shape index: {}]
  %s3 = inlined_call_operand.vmem [shape: f32[64,32], index: 3, kind: input, shape index: {}]
  %s4 = inlined_call_operand.vmem [shape: f32[1,32], index: 4, kind: input, shape index: {}]
  %s5 = inlined_call_operand.vmem [shape: f32[1,32], index: 5, kind: input, shape index: {}]
  %s6 = inlined_call_operand.vmem [shape: f32[1,32], index: 6, kind: input, shape index: {}]
  %s7 = inlined_call_operand.hbm [shape: f32[16,32], index: 7, kind: output, shape index: {}]
  %s8 = sld [smem:[#allocation0]]
  $region69: #{tpu_custom_call.1} parent=0
    _
  %s10 = ssub.s32 1, %s8
  %s11 = scalar_select 0, %s10, %s8
  $region1: #{tpu_custom_call.1} parent=0
    #allocation3 [shape = 'u8[8192]{0}', space=vmem, size = 0x2000, scoped, tag = 'output window, operand 0']
    #allocation4 [shape = 's32[2]{0}', space=sflag, size = 0x8, scoped, tag = 'scoped memory for tpu_custom_call.1']
    %12 = vsyncpa [#allocation4], 0
    %s13 = scalar_lea.sflag [#allocation4], 1
    %14 = vsyncpa %s13, 0
    loop: start=0, step=1, limit=4
    $region2: #{tpu_custom_call.1} parent=1 // loop_pre_header
      _
    $region3: #{tpu_custom_call.1} parent=1 // loop_header
      %s16 = sphi 0, %s20
      %p17 = scmp.ge.s32.totalorder %s16, 4
      %s23 = sphi 0, %s35
      %s24 = sphi 0, %s31
      %s25 = sphi 0, %s23
      %s26 = sphi 0, %s24
      %s27 = sphi 0, %s25
      %s28 = sphi 0, %s26
      %s38 = sphi 0, %s40
      %s41 = sphi 0, %s38
      %s42 = sphi 0, %s41
      %s58 = sphi 0, %s42
      %s64 = sphi 0, %s66
      %s67 = sphi 0, %s64
      %s68 = sphi 0, %s67
      %s84 = sphi 0, %s68
      %s90 = sphi 0, %s92
      %s93 = sphi 0, %s90
      %s94 = sphi 0, %s93
      %s110 = sphi 0, %s94
      %s116 = sphi 0, %s118
      %s119 = sphi 0, %s116
      %s120 = sphi 0, %s119
      %s136 = sphi 0, %s120
      %s140 = sphi 0, %s140
      %s142 = sphi 0, %s140
      %s143 = sphi 0, %s142
      %s157 = sphi 0, %s143
      %s161 = sphi 0, %s161
      %s163 = sphi 0, %s161
      %s164 = sphi 0, %s163
      %s178 = sphi 0, %s164
      %s182 = sphi 0, %s182
      %s184 = sphi 0, %s182
      %s185 = sphi 0, %s184
      %s199 = sphi 0, %s185
      %s205 = sphi 0, %s207
      %s208 = sphi 0, %s205
      %s209 = sphi 0, %s208
      %s225 = sphi 0, %s209
    $region4: #{tpu_custom_call.1} parent=1 // loop_header_branch
      %19 = sbr.rel (%p17) target = $region8
    $region5: #{tpu_custom_call.1} parent=1 // loop_body
      %s21 = ssub.s32 %s16, 1
      %s22 = ssub.s32 %s16, 2
      %s29 = sadd.s32 1, %s24
      %p30 = scmp.ge.s32.totalorder %s29, 1
      %s31 = scalar_select %p30, 0, %s29
      %s32 = sadd.s32 1, %s23
      %s33 = scalar_select %p30, %s32, %s23
      %p34 = scmp.ge.s32.totalorder %s33, 2
      %s35 = scalar_select %p34, 0, %s33
      %s36 = ssub.s32 %s23, %s35
      %p37 = scmp.eq.s32.totalorder %s36, 0
      %s39 = sadd.s32 %s38, 1
      %s40 = scalar_select %p37, %s38, %s39
      %p43 = pneg %p37
      %p44 = scmp.eq.s32.totalorder %s16, 1
      %p45 = por %p43, %p44
      %p46 = scmp.ne.s32.totalorder %s38, %s41
      %p47 = scmp.eq.s32.totalorder %s16, 0
      %p48 = por %p46, %p47
      %p49 = scmp.ne.s32.totalorder %s38, %s41
      %p50 = scmp.eq.s32.totalorder %s21, 1
      %p51 = por %p49, %p50
      %p52 = scmp.ne.s32.totalorder %s41, %s42
      %p53 = scmp.eq.s32.totalorder %s21, 0
      %p54 = por %p52, %p53
      %p55 = scmp.ne.s32.totalorder %s41, %s42
      %p56 = scmp.eq.s32.totalorder %s22, 1
      %p57 = por %p55, %p56
      %p59 = scmp.ne.s32.totalorder %s42, %s58
      %p60 = scmp.eq.s32.totalorder %s22, 0
      %p61 = por %p59, %p60
      %s62 = ssub.s32 %s24, %s31
      %p63 = scmp.eq.s32.totalorder %s62, 0
      %s65 = sadd.s32 %s64, 1
      %s66 = scalar_select %p63, %s64, %s65
      %p69 = pneg %p63
      %p70 = scmp.eq.s32.totalorder %s16, 1
      %p71 = por %p69, %p70
      %p72 = scmp.ne.s32.totalorder %s64, %s67
      %p73 = scmp.eq.s32.totalorder %s16, 0
      %p74 = por %p72, %p73
      %p75 = scmp.ne.s32.totalorder %s64, %s67
      %p76 = scmp.eq.s32.totalorder %s21, 1
      %p77 = por %p75, %p76
      %p78 = scmp.ne.s32.totalorder %s67, %s68
      %p79 = scmp.eq.s32.totalorder %s21, 0
      %p80 = por %p78, %p79
      %p81 = scmp.ne.s32.totalorder %s67, %s68
      %p82 = scmp.eq.s32.totalorder %s22, 1
      %p83 = por %p81, %p82
      %p85 = scmp.ne.s32.totalorder %s68, %s84
      %p86 = scmp.eq.s32.totalorder %s22, 0
      %p87 = por %p85, %p86
      %s88 = ssub.s32 %s24, %s31
      %p89 = scmp.eq.s32.totalorder %s88, 0
      %s91 = sadd.s32 %s90, 1
      %s92 = scalar_select %p89, %s90, %s91
      %p95 = pneg %p89
      %p96 = scmp.eq.s32.totalorder %s16, 1
      %p97 = por %p95, %p96
      %p98 = scmp.ne.s32.totalorder %s90, %s93
      %p99 = scmp.eq.s32.totalorder %s16, 0
      %p100 = por %p98, %p99
      %p101 = scmp.ne.s32.totalorder %s90, %s93
      %p102 = scmp.eq.s32.totalorder %s21, 1
      %p103 = por %p101, %p102
      %p104 = scmp.ne.s32.totalorder %s93, %s94
      %p105 = scmp.eq.s32.totalorder %s21, 0
      %p106 = por %p104, %p105
      %p107 = scmp.ne.s32.totalorder %s93, %s94
      %p108 = scmp.eq.s32.totalorder %s22, 1
      %p109 = por %p107, %p108
      %p111 = scmp.ne.s32.totalorder %s94, %s110
      %p112 = scmp.eq.s32.totalorder %s22, 0
      %p113 = por %p111, %p112
      %s114 = ssub.s32 %s24, %s31
      %p115 = scmp.eq.s32.totalorder %s114, 0
      %s117 = sadd.s32 %s116, 1
      %s118 = scalar_select %p115, %s116, %s117
      %p121 = pneg %p115
      %p122 = scmp.eq.s32.totalorder %s16, 1
      %p123 = por %p121, %p122
      %p124 = scmp.ne.s32.totalorder %s116, %s119
      %p125 = scmp.eq.s32.totalorder %s16, 0
      %p126 = por %p124, %p125
      %p127 = scmp.ne.s32.totalorder %s116, %s119
      %p128 = scmp.eq.s32.totalorder %s21, 1
      %p129 = por %p127, %p128
      %p130 = scmp.ne.s32.totalorder %s119, %s120
      %p131 = scmp.eq.s32.totalorder %s21, 0
      %p132 = por %p130, %p131
      %p133 = scmp.ne.s32.totalorder %s119, %s120
      %p134 = scmp.eq.s32.totalorder %s22, 1
      %p135 = por %p133, %p134
      %p137 = scmp.ne.s32.totalorder %s120, %s136
      %p138 = scmp.eq.s32.totalorder %s22, 0
      %p139 = por %p137, %p138
      %s141 = sadd.s32 %s140, 1
      %p144 = scmp.eq.s32.totalorder %s16, 1
      %p145 = scmp.ne.s32.totalorder %s140, %s142
      %p146 = scmp.eq.s32.totalorder %s16, 0
      %p147 = por %p145, %p146
      %p148 = scmp.ne.s32.totalorder %s140, %s142
      %p149 = scmp.eq.s32.totalorder %s21, 1
      %p150 = por %p148, %p149
      %p151 = scmp.ne.s32.totalorder %s142, %s143
      %p152 = scmp.eq.s32.totalorder %s21, 0
      %p153 = por %p151, %p152
      %p154 = scmp.ne.s32.totalorder %s142, %s143
      %p155 = scmp.eq.s32.totalorder %s22, 1
      %p156 = por %p154, %p155
      %p158 = scmp.ne.s32.totalorder %s143, %s157
      %p159 = scmp.eq.s32.totalorder %s22, 0
      %p160 = por %p158, %p159
      %s162 = sadd.s32 %s161, 1
      %p165 = scmp.eq.s32.totalorder %s16, 1
      %p166 = scmp.ne.s32.totalorder %s161, %s163
      %p167 = scmp.eq.s32.totalorder %s16, 0
      %p168 = por %p166, %p167
      %p169 = scmp.ne.s32.totalorder %s161, %s163
      %p170 = scmp.eq.s32.totalorder %s21, 1
      %p171 = por %p169, %p170
      %p172 = scmp.ne.s32.totalorder %s163, %s164
      %p173 = scmp.eq.s32.totalorder %s21, 0
      %p174 = por %p172, %p173
      %p175 = scmp.ne.s32.totalorder %s163, %s164
      %p176 = scmp.eq.s32.totalorder %s22, 1
      %p177 = por %p175, %p176
      %p179 = scmp.ne.s32.totalorder %s164, %s178
      %p180 = scmp.eq.s32.totalorder %s22, 0
      %p181 = por %p179, %p180
      %s183 = sadd.s32 %s182, 1
      %p186 = scmp.eq.s32.totalorder %s16, 1
      %p187 = scmp.ne.s32.totalorder %s182, %s184
      %p188 = scmp.eq.s32.totalorder %s16, 0
      %p189 = por %p187, %p188
      %p190 = scmp.ne.s32.totalorder %s182, %s184
      %p191 = scmp.eq.s32.totalorder %s21, 1
      %p192 = por %p190, %p191
      %p193 = scmp.ne.s32.totalorder %s184, %s185
      %p194 = scmp.eq.s32.totalorder %s21, 0
      %p195 = por %p193, %p194
      %p196 = scmp.ne.s32.totalorder %s184, %s185
      %p197 = scmp.eq.s32.totalorder %s22, 1
      %p198 = por %p196, %p197
      %p200 = scmp.ne.s32.totalorder %s185, %s199
      %p201 = scmp.eq.s32.totalorder %s22, 0
      %p202 = por %p200, %p201
      %s203 = ssub.s32 %s23, %s35
      %p204 = scmp.eq.s32.totalorder %s203, 0
      %s206 = sadd.s32 %s205, 1
      %s207 = scalar_select %p204, %s205, %s206
      %p210 = pneg %p204
      %p211 = scmp.eq.s32.totalorder %s16, 1
      %p212 = por %p210, %p211
      %p213 = scmp.ne.s32.totalorder %s205, %s208
      %p214 = scmp.eq.s32.totalorder %s16, 0
      %p215 = por %p213, %p214
      %p216 = scmp.ne.s32.totalorder %s205, %s208
      %p217 = scmp.eq.s32.totalorder %s21, 1
      %p218 = por %p216, %p217
      %p219 = scmp.ne.s32.totalorder %s208, %s209
      %p220 = scmp.eq.s32.totalorder %s21, 0
      %p221 = por %p219, %p220
      %p222 = scmp.ne.s32.totalorder %s208, %s209
      %p223 = scmp.eq.s32.totalorder %s22, 1
      %p224 = por %p222, %p223
      %p226 = scmp.ne.s32.totalorder %s209, %s225
      %p227 = scmp.eq.s32.totalorder %s22, 0
      %p228 = por %p226, %p227
      %p229 = scmp.le.s32.totalorder 1, %s16
      %p230 = scmp.lt.s32.totalorder %s16, 3
      %p231 = pnand %p229, %p230
      %p232 = pneg %p231
      // Predicated region
      $region9: #{tpu_custom_call.1} parent=5 // pred_check
        _
      $region10: #{tpu_custom_call.1} parent=5 // pred_check_branch
        %234 = sbr.rel (%p231) target = $region12
      $region11: #{tpu_custom_call.1} parent=5 // pred_region
        %s235 = ssub.s32 %s16, 1
        // Predicated region
        $region13: #{tpu_custom_call.1} parent=11 // pred_check
          %p236 = pneg %p80
        $region14: #{tpu_custom_call.1} parent=11 // pred_check_branch
          %238 = sbr.rel (%p236) target = $region16
        $region15: #{tpu_custom_call.1} parent=11 // pred_region
          %p239 = scmp.lt.s32.totalorder %s26, 0
          %s240 = scalar_select %p239, %s26, 0
          %s241 = smul.addr %s240, 8
          %s242 = scalar_lea.vmem %s1, %s241
        $region16: #{tpu_custom_call.1} parent=11 // pred_fallthru
          _
        // Predicated region
        $region17: #{tpu_custom_call.1} parent=11 // pred_check
          %p243 = pneg %p106
        $region18: #{tpu_custom_call.1} parent=11 // pred_check_branch
          %245 = sbr.rel (%p243) target = $region20
        $region19: #{tpu_custom_call.1} parent=11 // pred_region
          %p246 = scmp.lt.s32.totalorder %s26, 0
          %s247 = scalar_select %p246, %s26, 0
          %s248 = scalar_lea.vmem %s2, %s247
        $region20: #{tpu_custom_call.1} parent=11 // pred_fallthru
          _
        // Predicated region
        $region21: #{tpu_custom_call.1} parent=11 // pred_check
          %p249 = pneg %p132
        $region22: #{tpu_custom_call.1} parent=11 // pred_check_branch
          %251 = sbr.rel (%p249) target = $region24
        $region23: #{tpu_custom_call.1} parent=11 // pred_region
          %s252 = smul.u32 8, %s26
          %p253 = scmp.lt.s32.totalorder %s252, 7
          %s254 = scalar_select %p253, %s252, 7
          %s255 = smul.addr %s254, 8
          %s256 = scalar_lea.vmem %s3, %s255
          %s257 = smul.u32 8, %s26
        $region24: #{tpu_custom_call.1} parent=11 // pred_fallthru
          _
        // Predicated region
        $region25: #{tpu_custom_call.1} parent=11 // pred_check
          %p258 = pneg %p153
        $region26: #{tpu_custom_call.1} parent=11 // pred_check_branch
          %260 = sbr.rel (%p258) target = $region28
        $region27: #{tpu_custom_call.1} parent=11 // pred_region
          _
        $region28: #{tpu_custom_call.1} parent=11 // pred_fallthru
          _
        // Predicated region
        $region29: #{tpu_custom_call.1} parent=11 // pred_check
          %p261 = pneg %p174
        $region30: #{tpu_custom_call.1} parent=11 // pred_check_branch
          %263 = sbr.rel (%p261) target = $region32
        $region31: #{tpu_custom_call.1} parent=11 // pred_region
          _
        $region32: #{tpu_custom_call.1} parent=11 // pred_fallthru
          _
        // Predicated region
        $region33: #{tpu_custom_call.1} parent=11 // pred_check
          %p264 = pneg %p195
        $region34: #{tpu_custom_call.1} parent=11 // pred_check_branch
          %266 = sbr.rel (%p264) target = $region36
        $region35: #{tpu_custom_call.1} parent=11 // pred_region
          _
        $region36: #{tpu_custom_call.1} parent=11 // pred_fallthru
          _
      $region12: #{tpu_custom_call.1} parent=5 // pred_fallthru
        _
      %p267 = scmp.lt.s32.totalorder %s16, 2
      // Predicated region
      $region37: #{tpu_custom_call.1} parent=5 // pred_check
        %p268 = pneg %p267
      $region38: #{tpu_custom_call.1} parent=5 // pred_check_branch
        %270 = sbr.rel (%p268) target = $region40
      $region39: #{tpu_custom_call.1} parent=5 // pred_region
        // Predicated region
        $region41: #{tpu_custom_call.1} parent=39 // pred_check
          %p271 = pneg %p48
        $region42: #{tpu_custom_call.1} parent=39 // pred_check_branch
          %273 = sbr.rel (%p271) target = $region44
        $region43: #{tpu_custom_call.1} parent=39 // pred_region
          %p274 = scmp.lt.s32.totalorder %s23, 1
          %s275 = scalar_select %p274, %s23, 1
          %s276 = smul.addr %s275, 8
          %s277 = scalar_lea.vmem %s0, %s276
        $region44: #{tpu_custom_call.1} parent=39 // pred_fallthru
          _
      $region40: #{tpu_custom_call.1} parent=5 // pred_fallthru
        _
      %p278 = scmp.le.s32.totalorder 1, %s16
      %p279 = scmp.lt.s32.totalorder %s16, 3
      %p280 = pnand %p278, %p279
      %p281 = pneg %p280
      // Predicated region
      $region45: #{tpu_custom_call.1} parent=5 // pred_check
        _
      $region46: #{tpu_custom_call.1} parent=5 // pred_check_branch
        %283 = sbr.rel (%p280) target = $region48
      $region47: #{tpu_custom_call.1} parent=5 // pred_region
        %s284 = ssub.s32 %s16, 1
        %p285 = scmp.lt.s32.totalorder %s25, 1
        %s286 = scalar_select %p285, %s25, 1
        %s287 = smul.addr %s286, 8
        %s288 = scalar_lea.vmem %s0, %s287
        %p289 = pneg %p54
        %p290 = pneg %p51
        %p291 = scmp.lt.s32.totalorder %s26, 0
        %s292 = scalar_select %p291, %s26, 0
        %s293 = smul.addr %s292, 8
        %s294 = scalar_lea.vmem %s1, %s293
        %p295 = pneg %p80
        %p296 = pneg %p77
        %p297 = scmp.lt.s32.totalorder %s26, 0
        %s298 = scalar_select %p297, %s26, 0
        %s299 = scalar_lea.vmem %s2, %s298
        %p300 = pneg %p106
        %p301 = pneg %p103
        %s302 = smul.u32 8, %s26
        %p303 = scmp.lt.s32.totalorder %s302, 7
        %s304 = scalar_select %p303, %s302, 7
        %s305 = smul.addr %s304, 8
        %s306 = scalar_lea.vmem %s3, %s305
        %p307 = pneg %p132
        %p308 = pneg %p129
        %p309 = pneg %p153
        %p310 = pneg %p150
        %p311 = pneg %p174
        %p312 = pneg %p171
        %p313 = pneg %p195
        %p314 = pneg %p192
        %p315 = pneg %p221
        %p316 = pneg %p218
        %s317 = sand.u32 %s208, 1
        %s318 = scalar_lea.sflag [#allocation4], %s317
        %s319 = sand.u32 %s208, 1
        %s320 = smul.addr %s319, 8
        %s321 = scalar_lea.vmem [#allocation3], %s320
        %p322 = scmp.lt.s32.totalorder %s25, 1
        %s323 = scalar_select %p322, %s25, 1
        %s324 = smul.addr %s323, 8
        %s325 = scalar_lea.vmem %s0, %s324
        %p326 = scmp.lt.s32.totalorder %s26, 0
        %s327 = scalar_select %p326, %s26, 0
        %s328 = smul.addr %s327, 8
        %s329 = scalar_lea.vmem %s1, %s328
        %p330 = scmp.lt.s32.totalorder %s26, 0
        %s331 = scalar_select %p330, %s26, 0
        %s332 = scalar_lea.vmem %s2, %s331
        %s333 = smul.u32 8, %s26
        %p334 = scmp.lt.s32.totalorder %s333, 7
        %s335 = scalar_select %p334, %s333, 7
        %s336 = smul.addr %s335, 8
        %s337 = scalar_lea.vmem %s3, %s336
        %s338 = smul.u32 8, %s26
        %p339 = scmp.eq.s32.totalorder %s26, 0
        // Predicated region
        $region49: #{tpu_custom_call.1} parent=47 // pred_check
          %p340 = pneg %p339
        $region50: #{tpu_custom_call.1} parent=47 // pred_check_branch
          %342 = sbr.rel (%p340) target = $region52
        $region51: #{tpu_custom_call.1} parent=47 // pred_region
          %vm343 = vcmask 261120
          %344 = vst.msk [vmem:[#allocation2] sm:$0xff] %vm343, 0.0
        $region52: #{tpu_custom_call.1} parent=47 // pred_fallthru
          _
        %v345 = vld [vmem:[%s325] sm:$0xff]
        %v346 = vld [vmem:[%s329] sm:$0xff]
        %v347 = vld [vmem:[%s329 + $0x8] sm:$0xff]
        %v348 = vld [vmem:[%s329 + $0x10] sm:$0xff]
        %v349 = vld [vmem:[%s329 + $0x18] sm:$0xff]
        %v350 = vld [vmem:[%s332] sm:$0x1]
        %v352 = vlaneseq
        %v353 = vshrl.u32 %v352, 7
        %v354 = vsub.s32 0, %v353
        %v355 = vrot.slane %v350, %v354
        %vm357 = vcmask 261120
        %v359 = vsel %vm357, %v345, 0
        %361 = vmatprep.subr.mxu0 0.0
        %362 = vmatpush1.msra.mxu0 %v346
        %363 = vmatprep.subr.mxu0 0.0
        %364 = vmatpush1.msra.mxu0 %v347
        %365 = vmatprep.subr.mxu0 0.0
        %366 = vmatpush1.msra.mxu0 %v348
        %367 = vmatprep.subr.mxu0 0.0
        %368 = vmatpush1.msra.mxu0 %v349
        %369 = vmatprep.subr.mxu0 0.0
        %370 = vmatpush1.msra.mxu0 0.0
        %371 = vmatprep.subr.mxu0 0.0
        %372 = vmatpush1.msra.mxu0 0.0
        %373 = vmatprep.subr.mxu0 0.0
        %374 = vmatpush1.msra.mxu0 0.0
        %375 = vmatprep.subr.mxu0 0.0
        %376 = vmatpush1.msra.mxu0 0.0
        %377 = vmatprep.subr.mxu0 0.0
        %378 = vmatpush1.msra.mxu0 0.0
        %379 = vmatprep.subr.mxu0 0.0
        %380 = vmatpush1.msra.mxu0 0.0
        %381 = vmatprep.subr.mxu0 0.0
        %382 = vmatpush1.msra.mxu0 0.0
        %383 = vmatprep.subr.mxu0 0.0
        %384 = vmatpush1.msra.mxu0 0.0
        %385 = vmatprep.subr.mxu0 0.0
        %386 = vmatpush1.msra.mxu0 0.0
        %387 = vmatprep.subr.mxu0 0.0
        %388 = vmatpush1.msra.mxu0 0.0
        %389 = vmatprep.subr.mxu0 0.0
        %390 = vmatpush1.msra.mxu0 0.0
        %391 = vmatprep.subr.mxu0 0.0
        %392 = vmatpush1.msra.mxu0 0.0
        %393 = vmatprep.subr.mxu0 0.0
        %394 = vmatpush1.msra.mxu0 0.0
        %395 = vmatprep.subr.mxu0 0.0
        %396 = vmatpush1.msra.mxu0 0.0
        %397 = vmatprep.subr.mxu0 0.0
        %398 = vmatpush1.msra.mxu0 0.0
        %399 = vmatprep.subr.mxu0 0.0
        %400 = vmatpush1.msra.mxu0 0.0
        %401 = vmatprep.subr.mxu0 0.0
        %402 = vmatpush1.msra.mxu0 0.0
        %403 = vmatprep.subr.mxu0 0.0
        %404 = vmatpush1.msra.mxu0 0.0
        %405 = vmatprep.subr.mxu0 0.0
        %406 = vmatpush1.msra.mxu0 0.0
        %407 = vmatprep.subr.mxu0 0.0
        %408 = vmatpush1.msra.mxu0 0.0
        %409 = vmatprep.subr.mxu0 0.0
        %410 = vmatpush1.msra.mxu0 0.0
        %411 = vmatprep.subr.mxu0 0.0
        %412 = vmatpush1.msra.mxu0 0.0
        %413 = vmatprep.subr.mxu0 0.0
        %414 = vmatpush1.msra.mxu0 0.0
        %415 = vmatprep.subr.mxu0 0.0
        %416 = vmatpush1.msra.mxu0 0.0
        %417 = vmatprep.subr.mxu0 0.0
        %418 = vmatpush1.msra.mxu0 0.0
        %419 = vmatprep.subr.mxu0 0.0
        %420 = vmatpush1.msra.mxu0 0.0
        %421 = vmatprep.subr.mxu0 0.0
        %422 = vmatpush1.msra.mxu0 0.0
        %423 = vmatprep.subr.mxu0 0.0
        %424 = vmatpush1.msra.mxu0 0.0
        %425 = vmatprep.mubr.f32.mxu0 0.0
        %426 = vmatmul.mubr.f32.gmra.mrb[0].mxu0 %v359
        %v427 = vpop.f32.mrb[0].mxu0
        %v428 = vadd.f32 %v355, %v427
        %v429 = vpop.f32.mrb[0].mxu0
        %430 = vdwg.mxu0
        %v431 = vmax.f32 %v428, 0.0
        %v432 = vld [vmem:[#allocation2] sm:$0xff]
        %v433 = vld [vmem:[%s337] sm:$0xff]
        %v434 = vld [vmem:[%s337 + $0x8] sm:$0xff]
        %v435 = vld [vmem:[%s337 + $0x10] sm:$0xff]
        %v436 = vld [vmem:[%s337 + $0x18] sm:$0xff]
        %v437 = vld [vmem:[%s337 + $0x20] sm:$0xff]
        %v438 = vld [vmem:[%s337 + $0x28] sm:$0xff]
        %v439 = vld [vmem:[%s337 + $0x30] sm:$0xff]
        %v440 = vld [vmem:[%s337 + $0x38] sm:$0xff]
        %vm441 = vcmask 523264
        %v443 = vsel %vm441, %v431, 0
        %445 = vmatprep.subr.mxu0 0.0
        %446 = vmatpush1.msra.mxu0 %v433
        %447 = vmatprep.subr.mxu0 0.0
        %448 = vmatpush1.msra.mxu0 %v434
        %449 = vmatprep.subr.mxu0 0.0
        %450 = vmatpush1.msra.mxu0 %v435
        %451 = vmatprep.subr.mxu0 0.0
        %452 = vmatpush1.msra.mxu0 %v436
        %453 = vmatprep.subr.mxu0 0.0
        %454 = vmatpush1.msra.mxu0 %v437
        %455 = vmatprep.subr.mxu0 0.0
        %456 = vmatpush1.msra.mxu0 %v438
        %457 = vmatprep.subr.mxu0 0.0
        %458 = vmatpush1.msra.mxu0 %v439
        %459 = vmatprep.subr.mxu0 0.0
        %460 = vmatpush1.msra.mxu0 %v440
        %461 = vmatprep.subr.mxu0 0.0
        %462 = vmatpush1.msra.mxu0 0.0
        %463 = vmatprep.subr.mxu0 0.0
        %464 = vmatpush1.msra.mxu0 0.0
        %465 = vmatprep.subr.mxu0 0.0
        %466 = vmatpush1.msra.mxu0 0.0
        %467 = vmatprep.subr.mxu0 0.0
        %468 = vmatpush1.msra.mxu0 0.0
        %469 = vmatprep.subr.mxu0 0.0
        %470 = vmatpush1.msra.mxu0 0.0
        %471 = vmatprep.subr.mxu0 0.0
        %472 = vmatpush1.msra.mxu0 0.0
        %473 = vmatprep.subr.mxu0 0.0
        %474 = vmatpush1.msra.mxu0 0.0
        %475 = vmatprep.subr.mxu0 0.0
        %476 = vmatpush1.msra.mxu0 0.0
        %477 = vmatprep.subr.mxu0 0.0
        %478 = vmatpush1.msra.mxu0 0.0
        %479 = vmatprep.subr.mxu0 0.0
        %480 = vmatpush1.msra.mxu0 0.0
        %481 = vmatprep.subr.mxu0 0.0
        %482 = vmatpush1.msra.mxu0 0.0
        %483 = vmatprep.subr.mxu0 0.0
        %484 = vmatpush1.msra.mxu0 0.0
        %485 = vmatprep.subr.mxu0 0.0
        %486 = vmatpush1.msra.mxu0 0.0
        %487 = vmatprep.subr.mxu0 0.0
        %488 = vmatpush1.msra.mxu0 0.0
        %489 = vmatprep.subr.mxu0 0.0
        %490 = vmatpush1.msra.mxu0 0.0
        %491 = vmatprep.subr.mxu0 0.0
        %492 = vmatpush1.msra.mxu0 0.0
        %493 = vmatprep.subr.mxu0 0.0
        %494 = vmatpush1.msra.mxu0 0.0
        %495 = vmatprep.subr.mxu0 0.0
        %496 = vmatpush1.msra.mxu0 0.0
        %497 = vmatprep.subr.mxu0 0.0
        %498 = vmatpush1.msra.mxu0 0.0
        %499 = vmatprep.subr.mxu0 0.0
        %500 = vmatpush1.msra.mxu0 0.0
        %501 = vmatprep.subr.mxu0 0.0
        %502 = vmatpush1.msra.mxu0 0.0
        %503 = vmatprep.subr.mxu0 0.0
        %504 = vmatpush1.msra.mxu0 0.0
        %505 = vmatprep.subr.mxu0 0.0
        %506 = vmatpush1.msra.mxu0 0.0
        %507 = vmatprep.subr.mxu0 0.0
        %508 = vmatpush1.msra.mxu0 0.0
        %509 = vmatprep.mubr.f32.mxu0 0.0
        %510 = vmatmul.mubr.f32.gmra.mrb[0].mxu0 %v443
        %v511 = vpop.f32.mrb[0].mxu0
        %v512 = vadd.f32 0.0, %v511
        %v513 = vpop.f32.mrb[0].mxu0
        %514 = vdwg.mxu0
        %v515 = vadd.f32 %v432, %v512
        %516 = vst.msk [vmem:[#allocation2] sm:$0xff] %vm357, %v515
        // Predicated region
        $region53: #{tpu_custom_call.1} parent=47 // pred_check
          %p517 = pneg %p339
        $region54: #{tpu_custom_call.1} parent=47 // pred_check_branch
          %519 = sbr.rel (%p517) target = $region56
        $region55: #{tpu_custom_call.1} parent=47 // pred_region
          %v520 = vld [vmem:[#allocation2] sm:$0xff]
          %v521 = vld [vmem:[%s4] sm:$0x1]
          %v523 = vlaneseq
          %v524 = vshrl.u32 %v523, 7
          %v525 = vsub.s32 0, %v524
          %v526 = vrot.slane %v521, %v525
          %v528 = vadd.f32 %v520, %v526
          %v529 = vadd.f32 %v528, %v345
          %v530 = vsel %vm357, %v529, 0.0
          %531 = vadd.xlane.f32.xlu0 %v530
          %v532 = vpop.xlane.xlu0 %531
          %v533 = vrcp.pop 32.0
          %v534 = vmul.f32 %v532, %v533
          %v535 = vmul.f32 %v529, %v529
          %v536 = vsel %vm357, %v535, 0.0
          %537 = vadd.xlane.f32.xlu0 %v536
          %v538 = vpop.xlane.xlu0 %537
          %v539 = vmul.f32 %v538, %v533
          %v540 = vmul.f32 %v534, %v534
          %v541 = vsub.f32 %v539, %v540
          %v542 = vmax.f32 %v541, 0.0
          %v543 = vsub.f32 %v529, %v534
          %v544 = vadd.f32 %v542, 1e-06
          %v545 = vrsqrt.pop %v544
          %v546 = vmul.f32 %v543, %v545
          %v547 = vld [vmem:[%s5] sm:$0x1]
          %v549 = vlaneseq
          %v550 = vshrl.u32 %v549, 7
          %v551 = vsub.s32 0, %v550
          %v552 = vrot.slane %v547, %v551
          %v554 = vmul.f32 %v546, %v552
          %v555 = vld [vmem:[%s6] sm:$0x1]
          %v557 = vlaneseq
          %v558 = vshrl.u32 %v557, 7
          %v559 = vsub.s32 0, %v558
          %v560 = vrot.slane %v555, %v559
          %v562 = vadd.f32 %v554, %v560
          %563 = vst.msk [vmem:[%s321] sm:$0xff] %vm357, %v562
        $region56: #{tpu_custom_call.1} parent=47 // pred_fallthru
          _
        %s564 = sand.u32 %s208, 1
        %s565 = scalar_lea.sflag [#allocation4], %s564
        %s566 = sand.u32 %s208, 1
        %s567 = smul.addr %s566, 8
        %s568 = scalar_lea.vmem [#allocation3], %s567
        // Predicated region
        $region57: #{tpu_custom_call.1} parent=47 // pred_check
          %p569 = pneg %p218
        $region58: #{tpu_custom_call.1} parent=47 // pred_check_branch
          %571 = sbr.rel (%p569) target = $region60
        $region59: #{tpu_custom_call.1} parent=47 // pred_region
          %s573 = ssub.s32 128, 128
          %574 = vsyncadd %s565, %s573
          %s575 = smul.addr %s25, 128
          %s576 = scalar_lea.hbm %s7, %s575
          %s578 = sshll.u32 %s568, 4
          %s579 = int_to_ptr.vmem [resolvable:$true] %s578
          %581 = dma.vmem_to_hbm [thread:$0]  %s579, 128, %s576, %s565
        $region60: #{tpu_custom_call.1} parent=47 // pred_fallthru
          _
      $region48: #{tpu_custom_call.1} parent=5 // pred_fallthru
        _
      %p582 = scmp.le.s32.totalorder 2, %s16
      // Predicated region
      $region61: #{tpu_custom_call.1} parent=5 // pred_check
        %p583 = pneg %p582
      $region62: #{tpu_custom_call.1} parent=5 // pred_check_branch
        %585 = sbr.rel (%p583) target = $region64
      $region63: #{tpu_custom_call.1} parent=5 // pred_region
        %s586 = ssub.s32 %s16, 2
        // Predicated region
        $region65: #{tpu_custom_call.1} parent=63 // pred_check
          %p587 = pneg %p224
        $region66: #{tpu_custom_call.1} parent=63 // pred_check_branch
          %589 = sbr.rel (%p587) target = $region68
        $region67: #{tpu_custom_call.1} parent=63 // pred_region
          %s590 = sand.u32 %s209, 1
          %s591 = scalar_lea.sflag [#allocation4], %s590
          %s592 = sand.u32 %s209, 1
          %s593 = smul.addr %s592, 8
          %s594 = scalar_lea.vmem [#allocation3], %s593
          %595 = dma.done %s591, 128
        $region68: #{tpu_custom_call.1} parent=63 // pred_fallthru
          _
      $region64: #{tpu_custom_call.1} parent=5 // pred_fallthru
        _
    $region6: #{tpu_custom_call.1} parent=1 // loop_footer
      %s20 = sadd.s32 1, %s16
    $region7: #{tpu_custom_call.1} parent=1 // loop_footer_branch
      %15 = sbr.rel target = $region3
    $region8: #{tpu_custom_call.1} parent=1 // loop_exit
      _
    %596 = vsyncpa [#allocation4], 1
    %s597 = scalar_lea.sflag [#allocation4], 1
    %598 = vsyncpa %s597, 1

// kernel: tpu_custom_call.1
$region0: #{tpu_custom_call.1}
  #allocation0 [shape = 'u32[]', space=smem, size = 0x4, offset = 0x4, fixed_abs, tag = 'smem constant byte address 0x4 - core index']
  #allocation1 [shape = 'u32[144,128]{1,0:T(1,128)}', space=vmem, size = 0x12000, scoped, tag = 'internal scratch']
  #allocation2 [shape = 'f32[8,32]{1,0:T(8,128)}', space=vmem, size = 0x1000, scoped, tag = 'scratch operand']
  %s0 = inlined_call_operand.vmem [shape: f32[16,32], index: 0, kind: input, shape index: {}]
  %s1 = inlined_call_operand.vmem [shape: f32[32,64], index: 1, kind: input, shape index: {}]
  %s2 = inlined_call_operand.vmem [shape: f32[1,64], index: 2, kind: input, shape index: {}]
  %s3 = inlined_call_operand.vmem [shape: f32[64,32], index: 3, kind: input, shape index: {}]
  %s4 = inlined_call_operand.vmem [shape: f32[1,32], index: 4, kind: input, shape index: {}]
  %s5 = inlined_call_operand.vmem [shape: f32[1,32], index: 5, kind: input, shape index: {}]
  %s6 = inlined_call_operand.vmem [shape: f32[1,32], index: 6, kind: input, shape index: {}]
  %s7 = inlined_call_operand.hbm [shape: f32[16,32], index: 7, kind: output, shape index: {}]
  %s8 = sld [smem:[#allocation0]]
  $region69: #{tpu_custom_call.1} parent=0
    _
  %s10 = ssub.s32 1, %s8
  %s11 = scalar_select 0, %s10, %s8
  $region1: #{tpu_custom_call.1} parent=0
    #allocation3 [shape = 'u8[8192]{0}', space=vmem, size = 0x2000, scoped, tag = 'output window, operand 0']
    #allocation4 [shape = 's32[2]{0}', space=sflag, size = 0x8, scoped, tag = 'scoped memory for tpu_custom_call.1']
    %12 = vsyncpa [#allocation4], 0
    %s13 = scalar_lea.sflag [#allocation4], 1
    %14 = vsyncpa %s13, 0
    loop: start=0, step=1, limit=4
    $region2: #{tpu_custom_call.1} parent=1 // loop_pre_header
      _
    $region3: #{tpu_custom_call.1} parent=1 // loop_header
      %s16 = sphi 0, %s20
      %p17 = scmp.ge.s32.totalorder %s16, 4
      %s23 = sphi 0, %s35
      %s24 = sphi 0, %s31
      %s25 = sphi 0, %s23
      %s26 = sphi 0, %s24
      %s27 = sphi 0, %s25
      %s28 = sphi 0, %s26
      %s38 = sphi 0, %s40
      %s41 = sphi 0, %s38
      %s42 = sphi 0, %s41
      %s58 = sphi 0, %s42
      %s64 = sphi 0, %s66
      %s67 = sphi 0, %s64
      %s68 = sphi 0, %s67
      %s84 = sphi 0, %s68
      %s90 = sphi 0, %s92
      %s93 = sphi 0, %s90
      %s94 = sphi 0, %s93
      %s110 = sphi 0, %s94
      %s116 = sphi 0, %s118
      %s119 = sphi 0, %s116
      %s120 = sphi 0, %s119
      %s136 = sphi 0, %s120
      %s140 = sphi 0, %s140
      %s142 = sphi 0, %s140
      %s143 = sphi 0, %s142
      %s157 = sphi 0, %s143
      %s161 = sphi 0, %s161
      %s163 = sphi 0, %s161
      %s164 = sphi 0, %s163
      %s178 = sphi 0, %s164
      %s182 = sphi 0, %s182
      %s184 = sphi 0, %s182
      %s185 = sphi 0, %s184
      %s199 = sphi 0, %s185
      %s205 = sphi 0, %s207
      %s208 = sphi 0, %s205
      %s209 = sphi 0, %s208
      %s225 = sphi 0, %s209
    $region4: #{tpu_custom_call.1} parent=1 // loop_header_branch
      %19 = sbr.rel (%p17) target = $region8
    $region5: #{tpu_custom_call.1} parent=1 // loop_body
      %s21 = ssub.s32 %s16, 1
      %s22 = ssub.s32 %s16, 2
      %s29 = sadd.s32 1, %s24
      %p30 = scmp.ge.s32.totalorder %s29, 1
      %s31 = scalar_select %p30, 0, %s29
      %s32 = sadd.s32 1, %s23
      %s33 = scalar_select %p30, %s32, %s23
      %p34 = scmp.ge.s32.totalorder %s33, 2
      %s35 = scalar_select %p34, 0, %s33
      %s36 = ssub.s32 %s23, %s35
      %p37 = scmp.eq.s32.totalorder %s36, 0
      %s39 = sadd.s32 %s38, 1
      %s40 = scalar_select %p37, %s38, %s39
      %p43 = pneg %p37
      %p44 = scmp.eq.s32.totalorder %s16, 1
      %p45 = por %p43, %p44
      %p46 = scmp.ne.s32.totalorder %s38, %s41
      %p47 = scmp.eq.s32.totalorder %s16, 0
      %p48 = por %p46, %p47
      %p49 = scmp.ne.s32.totalorder %s38, %s41
      %p50 = scmp.eq.s32.totalorder %s21, 1
      %p51 = por %p49, %p50
      %p52 = scmp.ne.s32.totalorder %s41, %s42
      %p53 = scmp.eq.s32.totalorder %s21, 0
      %p54 = por %p52, %p53
      %p55 = scmp.ne.s32.totalorder %s41, %s42
      %p56 = scmp.eq.s32.totalorder %s22, 1
      %p57 = por %p55, %p56
      %p59 = scmp.ne.s32.totalorder %s42, %s58
      %p60 = scmp.eq.s32.totalorder %s22, 0
      %p61 = por %p59, %p60
      %s62 = ssub.s32 %s24, %s31
      %p63 = scmp.eq.s32.totalorder %s62, 0
      %s65 = sadd.s32 %s64, 1
      %s66 = scalar_select %p63, %s64, %s65
      %p69 = pneg %p63
      %p70 = scmp.eq.s32.totalorder %s16, 1
      %p71 = por %p69, %p70
      %p72 = scmp.ne.s32.totalorder %s64, %s67
      %p73 = scmp.eq.s32.totalorder %s16, 0
      %p74 = por %p72, %p73
      %p75 = scmp.ne.s32.totalorder %s64, %s67
      %p76 = scmp.eq.s32.totalorder %s21, 1
      %p77 = por %p75, %p76
      %p78 = scmp.ne.s32.totalorder %s67, %s68
      %p79 = scmp.eq.s32.totalorder %s21, 0
      %p80 = por %p78, %p79
      %p81 = scmp.ne.s32.totalorder %s67, %s68
      %p82 = scmp.eq.s32.totalorder %s22, 1
      %p83 = por %p81, %p82
      %p85 = scmp.ne.s32.totalorder %s68, %s84
      %p86 = scmp.eq.s32.totalorder %s22, 0
      %p87 = por %p85, %p86
      %s88 = ssub.s32 %s24, %s31
      %p89 = scmp.eq.s32.totalorder %s88, 0
      %s91 = sadd.s32 %s90, 1
      %s92 = scalar_select %p89, %s90, %s91
      %p95 = pneg %p89
      %p96 = scmp.eq.s32.totalorder %s16, 1
      %p97 = por %p95, %p96
      %p98 = scmp.ne.s32.totalorder %s90, %s93
      %p99 = scmp.eq.s32.totalorder %s16, 0
      %p100 = por %p98, %p99
      %p101 = scmp.ne.s32.totalorder %s90, %s93
      %p102 = scmp.eq.s32.totalorder %s21, 1
      %p103 = por %p101, %p102
      %p104 = scmp.ne.s32.totalorder %s93, %s94
      %p105 = scmp.eq.s32.totalorder %s21, 0
      %p106 = por %p104, %p105
      %p107 = scmp.ne.s32.totalorder %s93, %s94
      %p108 = scmp.eq.s32.totalorder %s22, 1
      %p109 = por %p107, %p108
      %p111 = scmp.ne.s32.totalorder %s94, %s110
      %p112 = scmp.eq.s32.totalorder %s22, 0
      %p113 = por %p111, %p112
      %s114 = ssub.s32 %s24, %s31
      %p115 = scmp.eq.s32.totalorder %s114, 0
      %s117 = sadd.s32 %s116, 1
      %s118 = scalar_select %p115, %s116, %s117
      %p121 = pneg %p115
      %p122 = scmp.eq.s32.totalorder %s16, 1
      %p123 = por %p121, %p122
      %p124 = scmp.ne.s32.totalorder %s116, %s119
      %p125 = scmp.eq.s32.totalorder %s16, 0
      %p126 = por %p124, %p125
      %p127 = scmp.ne.s32.totalorder %s116, %s119
      %p128 = scmp.eq.s32.totalorder %s21, 1
      %p129 = por %p127, %p128
      %p130 = scmp.ne.s32.totalorder %s119, %s120
      %p131 = scmp.eq.s32.totalorder %s21, 0
      %p132 = por %p130, %p131
      %p133 = scmp.ne.s32.totalorder %s119, %s120
      %p134 = scmp.eq.s32.totalorder %s22, 1
      %p135 = por %p133, %p134
      %p137 = scmp.ne.s32.totalorder %s120, %s136
      %p138 = scmp.eq.s32.totalorder %s22, 0
      %p139 = por %p137, %p138
      %s141 = sadd.s32 %s140, 1
      %p144 = scmp.eq.s32.totalorder %s16, 1
      %p145 = scmp.ne.s32.totalorder %s140, %s142
      %p146 = scmp.eq.s32.totalorder %s16, 0
      %p147 = por %p145, %p146
      %p148 = scmp.ne.s32.totalorder %s140, %s142
      %p149 = scmp.eq.s32.totalorder %s21, 1
      %p150 = por %p148, %p149
      %p151 = scmp.ne.s32.totalorder %s142, %s143
      %p152 = scmp.eq.s32.totalorder %s21, 0
      %p153 = por %p151, %p152
      %p154 = scmp.ne.s32.totalorder %s142, %s143
      %p155 = scmp.eq.s32.totalorder %s22, 1
      %p156 = por %p154, %p155
      %p158 = scmp.ne.s32.totalorder %s143, %s157
      %p159 = scmp.eq.s32.totalorder %s22, 0
      %p160 = por %p158, %p159
      %s162 = sadd.s32 %s161, 1
      %p165 = scmp.eq.s32.totalorder %s16, 1
      %p166 = scmp.ne.s32.totalorder %s161, %s163
      %p167 = scmp.eq.s32.totalorder %s16, 0
      %p168 = por %p166, %p167
      %p169 = scmp.ne.s32.totalorder %s161, %s163
      %p170 = scmp.eq.s32.totalorder %s21, 1
      %p171 = por %p169, %p170
      %p172 = scmp.ne.s32.totalorder %s163, %s164
      %p173 = scmp.eq.s32.totalorder %s21, 0
      %p174 = por %p172, %p173
      %p175 = scmp.ne.s32.totalorder %s163, %s164
      %p176 = scmp.eq.s32.totalorder %s22, 1
      %p177 = por %p175, %p176
      %p179 = scmp.ne.s32.totalorder %s164, %s178
      %p180 = scmp.eq.s32.totalorder %s22, 0
      %p181 = por %p179, %p180
      %s183 = sadd.s32 %s182, 1
      %p186 = scmp.eq.s32.totalorder %s16, 1
      %p187 = scmp.ne.s32.totalorder %s182, %s184
      %p188 = scmp.eq.s32.totalorder %s16, 0
      %p189 = por %p187, %p188
      %p190 = scmp.ne.s32.totalorder %s182, %s184
      %p191 = scmp.eq.s32.totalorder %s21, 1
      %p192 = por %p190, %p191
      %p193 = scmp.ne.s32.totalorder %s184, %s185
      %p194 = scmp.eq.s32.totalorder %s21, 0
      %p195 = por %p193, %p194
      %p196 = scmp.ne.s32.totalorder %s184, %s185
      %p197 = scmp.eq.s32.totalorder %s22, 1
      %p198 = por %p196, %p197
      %p200 = scmp.ne.s32.totalorder %s185, %s199
      %p201 = scmp.eq.s32.totalorder %s22, 0
      %p202 = por %p200, %p201
      %s203 = ssub.s32 %s23, %s35
      %p204 = scmp.eq.s32.totalorder %s203, 0
      %s206 = sadd.s32 %s205, 1
      %s207 = scalar_select %p204, %s205, %s206
      %p210 = pneg %p204
      %p211 = scmp.eq.s32.totalorder %s16, 1
      %p212 = por %p210, %p211
      %p213 = scmp.ne.s32.totalorder %s205, %s208
      %p214 = scmp.eq.s32.totalorder %s16, 0
      %p215 = por %p213, %p214
      %p216 = scmp.ne.s32.totalorder %s205, %s208
      %p217 = scmp.eq.s32.totalorder %s21, 1
      %p218 = por %p216, %p217
      %p219 = scmp.ne.s32.totalorder %s208, %s209
      %p220 = scmp.eq.s32.totalorder %s21, 0
      %p221 = por %p219, %p220
      %p222 = scmp.ne.s32.totalorder %s208, %s209
      %p223 = scmp.eq.s32.totalorder %s22, 1
      %p224 = por %p222, %p223
      %p226 = scmp.ne.s32.totalorder %s209, %s225
      %p227 = scmp.eq.s32.totalorder %s22, 0
      %p228 = por %p226, %p227
      %p229 = scmp.le.s32.totalorder 1, %s16
      %p230 = scmp.lt.s32.totalorder %s16, 3
      %p231 = pnand %p229, %p230
      %p232 = pneg %p231
      // Predicated region
      $region9: #{tpu_custom_call.1} parent=5 // pred_check
        _
      $region10: #{tpu_custom_call.1} parent=5 // pred_check_branch
        %234 = sbr.rel (%p231) target = $region12
      $region11: #{tpu_custom_call.1} parent=5 // pred_region
        %s235 = ssub.s32 %s16, 1
        // Predicated region
        $region13: #{tpu_custom_call.1} parent=11 // pred_check
          %p236 = pneg %p80
        $region14: #{tpu_custom_call.1} parent=11 // pred_check_branch
          %238 = sbr.rel (%p236) target = $region16
        $region15: #{tpu_custom_call.1} parent=11 // pred_region
          %p239 = scmp.lt.s32.totalorder %s26, 0
          %s240 = scalar_select %p239, %s26, 0
          %s241 = smul.addr %s240, 8
          %s242 = scalar_lea.vmem %s1, %s241
        $region16: #{tpu_custom_call.1} parent=11 // pred_fallthru
          _
        // Predicated region
        $region17: #{tpu_custom_call.1} parent=11 // pred_check
          %p243 = pneg %p106
        $region18: #{tpu_custom_call.1} parent=11 // pred_check_branch
          %245 = sbr.rel (%p243) target = $region20
        $region19: #{tpu_custom_call.1} parent=11 // pred_region
          %p246 = scmp.lt.s32.totalorder %s26, 0
          %s247 = scalar_select %p246, %s26, 0
          %s248 = scalar_lea.vmem %s2, %s247
        $region20: #{tpu_custom_call.1} parent=11 // pred_fallthru
          _
        // Predicated region
        $region21: #{tpu_custom_call.1} parent=11 // pred_check
          %p249 = pneg %p132
        $region22: #{tpu_custom_call.1} parent=11 // pred_check_branch
          %251 = sbr.rel (%p249) target = $region24
        $region23: #{tpu_custom_call.1} parent=11 // pred_region
          %s252 = smul.u32 8, %s26
          %p253 = scmp.lt.s32.totalorder %s252, 7
          %s254 = scalar_select %p253, %s252, 7
          %s255 = smul.addr %s254, 8
          %s256 = scalar_lea.vmem %s3, %s255
          %s257 = smul.u32 8, %s26
        $region24: #{tpu_custom_call.1} parent=11 // pred_fallthru
          _
        // Predicated region
        $region25: #{tpu_custom_call.1} parent=11 // pred_check
          %p258 = pneg %p153
        $region26: #{tpu_custom_call.1} parent=11 // pred_check_branch
          %260 = sbr.rel (%p258) target = $region28
        $region27: #{tpu_custom_call.1} parent=11 // pred_region
          _
        $region28: #{tpu_custom_call.1} parent=11 // pred_fallthru
          _
        // Predicated region
        $region29: #{tpu_custom_call.1} parent=11 // pred_check
          %p261 = pneg %p174
        $region30: #{tpu_custom_call.1} parent=11 // pred_check_branch
          %263 = sbr.rel (%p261) target = $region32
        $region31: #{tpu_custom_call.1} parent=11 // pred_region
          _
        $region32: #{tpu_custom_call.1} parent=11 // pred_fallthru
          _
        // Predicated region
        $region33: #{tpu_custom_call.1} parent=11 // pred_check
          %p264 = pneg %p195
        $region34: #{tpu_custom_call.1} parent=11 // pred_check_branch
          %266 = sbr.rel (%p264) target = $region36
        $region35: #{tpu_custom_call.1} parent=11 // pred_region
          _
        $region36: #{tpu_custom_call.1} parent=11 // pred_fallthru
          _
      $region12: #{tpu_custom_call.1} parent=5 // pred_fallthru
        _
      %p267 = scmp.lt.s32.totalorder %s16, 2
      // Predicated region
      $region37: #{tpu_custom_call.1} parent=5 // pred_check
        %p268 = pneg %p267
      $region38: #{tpu_custom_call.1} parent=5 // pred_check_branch
        %270 = sbr.rel (%p268) target = $region40
      $region39: #{tpu_custom_call.1} parent=5 // pred_region
        // Predicated region
        $region41: #{tpu_custom_call.1} parent=39 // pred_check
          %p271 = pneg %p48
        $region42: #{tpu_custom_call.1} parent=39 // pred_check_branch
          %273 = sbr.rel (%p271) target = $region44
        $region43: #{tpu_custom_call.1} parent=39 // pred_region
          %p274 = scmp.lt.s32.totalorder %s23, 1
          %s275 = scalar_select %p274, %s23, 1
          %s276 = smul.addr %s275, 8
          %s277 = scalar_lea.vmem %s0, %s276
        $region44: #{tpu_custom_call.1} parent=39 // pred_fallthru
          _
      $region40: #{tpu_custom_call.1} parent=5 // pred_fallthru
        _
      %p278 = scmp.le.s32.totalorder 1, %s16
      %p279 = scmp.lt.s32.totalorder %s16, 3
      %p280 = pnand %p278, %p279
      %p281 = pneg %p280
      // Predicated region
      $region45: #{tpu_custom_call.1} parent=5 // pred_check
        _
      $region46: #{tpu_custom_call.1} parent=5 // pred_check_branch
        %283 = sbr.rel (%p280) target = $region48
      $region47: #{tpu_custom_call.1} parent=5 // pred_region
        %s284 = ssub.s32 %s16, 1
        %p285 = scmp.lt.s32.totalorder %s25, 1
        %s286 = scalar_select %p285, %s25, 1
        %s287 = smul.addr %s286, 8
        %s288 = scalar_lea.vmem %s0, %s287
        %p289 = pneg %p54
        %p290 = pneg %p51
        %p291 = scmp.lt.s32.totalorder %s26, 0
        %s292 = scalar_select %p291, %s26, 0
        %s293 = smul.addr %s292, 8
        %s294 = scalar_lea.vmem %s1, %s293
        %p295 = pneg %p80
        %p296 = pneg %p77
        %p297 = scmp.lt.s32.totalorder %s26, 0
        %s298 = scalar_select %p297, %s26, 0
        %s299 = scalar_lea.vmem %s2, %s298
        %p300 = pneg %p106
        %p301 = pneg %p103
        %s302 = smul.u32 8, %s26
        %p303 = scmp.lt.s32.totalorder %s302, 7
        %s304 = scalar_select %p303, %s302, 7
        %s305 = smul.addr %s304, 8
        %s306 = scalar_lea.vmem %s3, %s305
        %p307 = pneg %p132
        %p308 = pneg %p129
        %p309 = pneg %p153
        %p310 = pneg %p150
        %p311 = pneg %p174
        %p312 = pneg %p171
        %p313 = pneg %p195
        %p314 = pneg %p192
        %p315 = pneg %p221
        %p316 = pneg %p218
        %s317 = sand.u32 %s208, 1
        %s318 = scalar_lea.sflag [#allocation4], %s317
        %s319 = sand.u32 %s208, 1
        %s320 = smul.addr %s319, 8
        %s321 = scalar_lea.vmem [#allocation3], %s320
        %p322 = scmp.lt.s32.totalorder %s25, 1
        %s323 = scalar_select %p322, %s25, 1
        %s324 = smul.addr %s323, 8
        %s325 = scalar_lea.vmem %s0, %s324
        %p326 = scmp.lt.s32.totalorder %s26, 0
        %s327 = scalar_select %p326, %s26, 0
        %s328 = smul.addr %s327, 8
        %s329 = scalar_lea.vmem %s1, %s328
        %p330 = scmp.lt.s32.totalorder %s26, 0
        %s331 = scalar_select %p330, %s26, 0
        %s332 = scalar_lea.vmem %s2, %s331
        %s333 = smul.u32 8, %s26
        %p334 = scmp.lt.s32.totalorder %s333, 7
        %s335 = scalar_select %p334, %s333, 7
        %s336 = smul.addr %s335, 8
        %s337 = scalar_lea.vmem %s3, %s336
        %s338 = smul.u32 8, %s26
        %p339 = scmp.eq.s32.totalorder %s26, 0
        // Predicated region
        $region49: #{tpu_custom_call.1} parent=47 // pred_check
          %p340 = pneg %p339
        $region50: #{tpu_custom_call.1} parent=47 // pred_check_branch
          %342 = sbr.rel (%p340) target = $region52
        $region51: #{tpu_custom_call.1} parent=47 // pred_region
          %vm343 = vcmask 261120
          %344 = vst.msk [vmem:[#allocation2] sm:$0xff] %vm343, 0.0
        $region52: #{tpu_custom_call.1} parent=47 // pred_fallthru
          _
        %v345 = vld [vmem:[%s325] sm:$0xff]
        %v346 = vld [vmem:[%s329] sm:$0xff]
        %v347 = vld [vmem:[%s329 + $0x8] sm:$0xff]
        %v348 = vld [vmem:[%s329 + $0x10] sm:$0xff]
        %v349 = vld [vmem:[%s329 + $0x18] sm:$0xff]
        %v350 = vld [vmem:[%s332] sm:$0x1]
        %v352 = vlaneseq
        %v353 = vshrl.u32 %v352, 7
        %v354 = vsub.s32 0, %v353
        %v355 = vrot.slane %v350, %v354
        %vm357 = vcmask 261120
        %v359 = vsel %vm357, %v345, 0
        %361 = vmatprep.subr.mxu0 0.0
        %362 = vmatpush1.msra.mxu0 %v346
        %363 = vmatprep.subr.mxu0 0.0
        %364 = vmatpush1.msra.mxu0 %v347
        %365 = vmatprep.subr.mxu0 0.0
        %366 = vmatpush1.msra.mxu0 %v348
        %367 = vmatprep.subr.mxu0 0.0
        %368 = vmatpush1.msra.mxu0 %v349
        %369 = vmatprep.subr.mxu0 0.0
        %370 = vmatpush1.msra.mxu0 0.0
        %371 = vmatprep.subr.mxu0 0.0
        %372 = vmatpush1.msra.mxu0 0.0
        %373 = vmatprep.subr.mxu0 0.0
        %374 = vmatpush1.msra.mxu0 0.0
        %375 = vmatprep.subr.mxu0 0.0
        %376 = vmatpush1.msra.mxu0 0.0
        %377 = vmatprep.subr.mxu0 0.0
        %378 = vmatpush1.msra.mxu0 0.0
        %379 = vmatprep.subr.mxu0 0.0
        %380 = vmatpush1.msra.mxu0 0.0
        %381 = vmatprep.subr.mxu0 0.0
        %382 = vmatpush1.msra.mxu0 0.0
        %383 = vmatprep.subr.mxu0 0.0
        %384 = vmatpush1.msra.mxu0 0.0
        %385 = vmatprep.subr.mxu0 0.0
        %386 = vmatpush1.msra.mxu0 0.0
        %387 = vmatprep.subr.mxu0 0.0
        %388 = vmatpush1.msra.mxu0 0.0
        %389 = vmatprep.subr.mxu0 0.0
        %390 = vmatpush1.msra.mxu0 0.0
        %391 = vmatprep.subr.mxu0 0.0
        %392 = vmatpush1.msra.mxu0 0.0
        %393 = vmatprep.subr.mxu0 0.0
        %394 = vmatpush1.msra.mxu0 0.0
        %395 = vmatprep.subr.mxu0 0.0
        %396 = vmatpush1.msra.mxu0 0.0
        %397 = vmatprep.subr.mxu0 0.0
        %398 = vmatpush1.msra.mxu0 0.0
        %399 = vmatprep.subr.mxu0 0.0
        %400 = vmatpush1.msra.mxu0 0.0
        %401 = vmatprep.subr.mxu0 0.0
        %402 = vmatpush1.msra.mxu0 0.0
        %403 = vmatprep.subr.mxu0 0.0
        %404 = vmatpush1.msra.mxu0 0.0
        %405 = vmatprep.subr.mxu0 0.0
        %406 = vmatpush1.msra.mxu0 0.0
        %407 = vmatprep.subr.mxu0 0.0
        %408 = vmatpush1.msra.mxu0 0.0
        %409 = vmatprep.subr.mxu0 0.0
        %410 = vmatpush1.msra.mxu0 0.0
        %411 = vmatprep.subr.mxu0 0.0
        %412 = vmatpush1.msra.mxu0 0.0
        %413 = vmatprep.subr.mxu0 0.0
        %414 = vmatpush1.msra.mxu0 0.0
        %415 = vmatprep.subr.mxu0 0.0
        %416 = vmatpush1.msra.mxu0 0.0
        %417 = vmatprep.subr.mxu0 0.0
        %418 = vmatpush1.msra.mxu0 0.0
        %419 = vmatprep.subr.mxu0 0.0
        %420 = vmatpush1.msra.mxu0 0.0
        %421 = vmatprep.subr.mxu0 0.0
        %422 = vmatpush1.msra.mxu0 0.0
        %423 = vmatprep.subr.mxu0 0.0
        %424 = vmatpush1.msra.mxu0 0.0
        %425 = vmatprep.mubr.f32.mxu0 0.0
        %426 = vmatmul.mubr.f32.gmra.mrb[0].mxu0 %v359
        %v427 = vpop.f32.mrb[0].mxu0
        %v428 = vadd.f32 %v355, %v427
        %v429 = vpop.f32.mrb[0].mxu0
        %430 = vdwg.mxu0
        %v431 = vmax.f32 %v428, 0.0
        %v432 = vld [vmem:[#allocation2] sm:$0xff]
        %v433 = vld [vmem:[%s337] sm:$0xff]
        %v434 = vld [vmem:[%s337 + $0x8] sm:$0xff]
        %v435 = vld [vmem:[%s337 + $0x10] sm:$0xff]
        %v436 = vld [vmem:[%s337 + $0x18] sm:$0xff]
        %v437 = vld [vmem:[%s337 + $0x20] sm:$0xff]
        %v438 = vld [vmem:[%s337 + $0x28] sm:$0xff]
        %v439 = vld [vmem:[%s337 + $0x30] sm:$0xff]
        %v440 = vld [vmem:[%s337 + $0x38] sm:$0xff]
        %vm441 = vcmask 523264
        %v443 = vsel %vm441, %v431, 0
        %445 = vmatprep.subr.mxu0 0.0
        %446 = vmatpush1.msra.mxu0 %v433
        %447 = vmatprep.subr.mxu0 0.0
        %448 = vmatpush1.msra.mxu0 %v434
        %449 = vmatprep.subr.mxu0 0.0
        %450 = vmatpush1.msra.mxu0 %v435
        %451 = vmatprep.subr.mxu0 0.0
        %452 = vmatpush1.msra.mxu0 %v436
        %453 = vmatprep.subr.mxu0 0.0
        %454 = vmatpush1.msra.mxu0 %v437
        %455 = vmatprep.subr.mxu0 0.0
        %456 = vmatpush1.msra.mxu0 %v438
        %457 = vmatprep.subr.mxu0 0.0
        %458 = vmatpush1.msra.mxu0 %v439
        %459 = vmatprep.subr.mxu0 0.0
        %460 = vmatpush1.msra.mxu0 %v440
        %461 = vmatprep.subr.mxu0 0.0
        %462 = vmatpush1.msra.mxu0 0.0
        %463 = vmatprep.subr.mxu0 0.0
        %464 = vmatpush1.msra.mxu0 0.0
        %465 = vmatprep.subr.mxu0 0.0
        %466 = vmatpush1.msra.mxu0 0.0
        %467 = vmatprep.subr.mxu0 0.0
        %468 = vmatpush1.msra.mxu0 0.0
        %469 = vmatprep.subr.mxu0 0.0
        %470 = vmatpush1.msra.mxu0 0.0
        %471 = vmatprep.subr.mxu0 0.0
        %472 = vmatpush1.msra.mxu0 0.0
        %473 = vmatprep.subr.mxu0 0.0
        %474 = vmatpush1.msra.mxu0 0.0
        %475 = vmatprep.subr.mxu0 0.0
        %476 = vmatpush1.msra.mxu0 0.0
        %477 = vmatprep.subr.mxu0 0.0
        %478 = vmatpush1.msra.mxu0 0.0
        %479 = vmatprep.subr.mxu0 0.0
        %480 = vmatpush1.msra.mxu0 0.0
        %481 = vmatprep.subr.mxu0 0.0
        %482 = vmatpush1.msra.mxu0 0.0
        %483 = vmatprep.subr.mxu0 0.0
        %484 = vmatpush1.msra.mxu0 0.0
        %485 = vmatprep.subr.mxu0 0.0
        %486 = vmatpush1.msra.mxu0 0.0
        %487 = vmatprep.subr.mxu0 0.0
        %488 = vmatpush1.msra.mxu0 0.0
        %489 = vmatprep.subr.mxu0 0.0
        %490 = vmatpush1.msra.mxu0 0.0
        %491 = vmatprep.subr.mxu0 0.0
        %492 = vmatpush1.msra.mxu0 0.0
        %493 = vmatprep.subr.mxu0 0.0
        %494 = vmatpush1.msra.mxu0 0.0
        %495 = vmatprep.subr.mxu0 0.0
        %496 = vmatpush1.msra.mxu0 0.0
        %497 = vmatprep.subr.mxu0 0.0
        %498 = vmatpush1.msra.mxu0 0.0
        %499 = vmatprep.subr.mxu0 0.0
        %500 = vmatpush1.msra.mxu0 0.0
        %501 = vmatprep.subr.mxu0 0.0
        %502 = vmatpush1.msra.mxu0 0.0
        %503 = vmatprep.subr.mxu0 0.0
        %504 = vmatpush1.msra.mxu0 0.0
        %505 = vmatprep.subr.mxu0 0.0
        %506 = vmatpush1.msra.mxu0 0.0
        %507 = vmatprep.subr.mxu0 0.0
        %508 = vmatpush1.msra.mxu0 0.0
        %509 = vmatprep.mubr.f32.mxu0 0.0
        %510 = vmatmul.mubr.f32.gmra.mrb[0].mxu0 %v443
        %v511 = vpop.f32.mrb[0].mxu0
        %v512 = vadd.f32 0.0, %v511
        %v513 = vpop.f32.mrb[0].mxu0
        %514 = vdwg.mxu0
        %v515 = vadd.f32 %v432, %v512
        %516 = vst.msk [vmem:[#allocation2] sm:$0xff] %vm357, %v515
        // Predicated region
        $region53: #{tpu_custom_call.1} parent=47 // pred_check
          %p517 = pneg %p339
        $region54: #{tpu_custom_call.1} parent=47 // pred_check_branch
          %519 = sbr.rel (%p517) target = $region56
        $region55: #{tpu_custom_call.1} parent=47 // pred_region
          %v520 = vld [vmem:[#allocation2] sm:$0xff]
          %v521 = vld [vmem:[%s4] sm:$0x1]
          %v523 = vlaneseq
          %v524 = vshrl.u32 %v523, 7
          %v525 = vsub.s32 0, %v524
          %v526 = vrot.slane %v521, %v525
          %v528 = vadd.f32 %v520, %v526
          %v529 = vadd.f32 %v528, %v345
          %v530 = vsel %vm357, %v529, 0.0
          %531 = vadd.xlane.f32.xlu0 %v530
          %v532 = vpop.xlane.xlu0 %531
          %v533 = vrcp.pop 32.0
          %v534 = vmul.f32 %v532, %v533
          %v535 = vmul.f32 %v529, %v529
          %v536 = vsel %vm357, %v535, 0.0
          %537 = vadd.xlane.f32.xlu0 %v536
          %v538 = vpop.xlane.xlu0 %537
          %v539 = vmul.f32 %v538, %v533
          %v540 = vmul.f32 %v534, %v534
          %v541 = vsub.f32 %v539, %v540
          %v542 = vmax.f32 %v541, 0.0
          %v543 = vsub.f32 %v529, %v534
          %v544 = vadd.f32 %v542, 1e-06
          %v545 = vrsqrt.pop %v544
          %v546 = vmul.f32 %v543, %v545
          %v547 = vld [vmem:[%s5] sm:$0x1]
          %v549 = vlaneseq
          %v550 = vshrl.u32 %v549, 7
          %v551 = vsub.s32 0, %v550
          %v552 = vrot.slane %v547, %v551
          %v554 = vmul.f32 %v546, %v552
          %v555 = vld [vmem:[%s6] sm:$0x1]
          %v557 = vlaneseq
          %v558 = vshrl.u32 %v557, 7
          %v559 = vsub.s32 0, %v558
          %v560 = vrot.slane %v555, %v559
          %v562 = vadd.f32 %v554, %v560
          %563 = vst.msk [vmem:[%s321] sm:$0xff] %vm357, %v562
        $region56: #{tpu_custom_call.1} parent=47 // pred_fallthru
          _
        %s564 = sand.u32 %s208, 1
        %s565 = scalar_lea.sflag [#allocation4], %s564
        %s566 = sand.u32 %s208, 1
        %s567 = smul.addr %s566, 8
        %s568 = scalar_lea.vmem [#allocation3], %s567
        // Predicated region
        $region57: #{tpu_custom_call.1} parent=47 // pred_check
          %p569 = pneg %p218
        $region58: #{tpu_custom_call.1} parent=47 // pred_check_branch
          %571 = sbr.rel (%p569) target = $region60
        $region59: #{tpu_custom_call.1} parent=47 // pred_region
          %s573 = ssub.s32 128, 128
          %574 = vsyncadd %s565, %s573
          %s575 = smul.addr %s25, 128
          %s576 = scalar_lea.hbm %s7, %s575
          %s578 = sshll.u32 %s568, 4
          %s579 = int_to_ptr.vmem [resolvable:$true] %s578
          %581 = dma.vmem_to_hbm [thread:$0]  %s579, 128, %s576, %s565
        $region60: #{tpu_custom_call.1} parent=47 // pred_fallthru
          _
      $region48: #{tpu_custom_call.1} parent=5 // pred_fallthru
        _
      %p582 = scmp.le.s32.totalorder 2, %s16
      // Predicated region
      $region61: #{tpu_custom_call.1} parent=5 // pred_check
        %p583 = pneg %p582
      $region62: #{tpu_custom_call.1} parent=5 // pred_check_branch
        %585 = sbr.rel (%p583) target = $region64
      $region63: #{tpu_custom_call.1} parent=5 // pred_region
        %s586 = ssub.s32 %s16, 2
        // Predicated region
        $region65: #{tpu_custom_call.1} parent=63 // pred_check
          %p587 = pneg %p224
        $region66: #{tpu_custom_call.1} parent=63 // pred_check_branch
          %589 = sbr.rel (%p587) target = $region68
        $region67: #{tpu_custom_call.1} parent=63 // pred_region
          %s590 = sand.u32 %s209, 1
          %s591 = scalar_lea.sflag [#allocation4], %s590
          %s592 = sand.u32 %s209, 1
          %s593 = smul.addr %s592, 8
          %s594 = scalar_lea.vmem [#allocation3], %s593
          %595 = dma.done %s591, 128
        $region68: #{tpu_custom_call.1} parent=63 // pred_fallthru
          _
      $region64: #{tpu_custom_call.1} parent=5 // pred_fallthru
        _
    $region6: #{tpu_custom_call.1} parent=1 // loop_footer
      %s20 = sadd.s32 1, %s16
    $region7: #{tpu_custom_call.1} parent=1 // loop_footer_branch
      %15 = sbr.rel target = $region3
    $region8: #{tpu_custom_call.1} parent=1 // loop_exit
      _
    %596 = vsyncpa [#allocation4], 1
    %s597 = scalar_lea.sflag [#allocation4], 1
    %598 = vsyncpa %s597, 1

</llo_original>
